<compile_context>
chip_gen: v7x
topology: tpu7x:2x2x1
jax: 0.10.0
libtpu: 0.0.40
codegen_flags: <defaults>
</compile_context>

<pallas_src>
import functools
import math

import jax
import jax.numpy as jnp
from jax.experimental import pallas as pl
from jax.experimental.pallas import tpu as pltpu

LN_EPS = 1e-5            # PyTorch nn.LayerNorm default eps
MASK_FILL = -1e9         # matches scores.masked_fill_(attn_mask, -1000000000.0)
OOB_FILL = -1e30         # for ragged KV tiles (never dominates the row max)


# ---------------------------------------------------------------------------
# VMEM budgeting helpers (generation aware)
# ---------------------------------------------------------------------------
def _vmem_budget_bytes():
    try:
        cap = int(getattr(pltpu.get_tpu_info(), "vmem_capacity_bytes"))
    except Exception:
        cap = 64 << 20                         # conservative (v7x per-TC VMEM)
    # ~48 MiB on v7x (64 MiB parts), ~96 MiB on v5e/v6e (128 MiB parts)
    return max(min((cap * 3) // 4, 100 << 20), 32 << 20)


def _clamp_limit(estimate, budget):
    return int(min(max(estimate, 16 << 20), budget))


def _pick_row_tile(M, row_bytes, fixed_bytes, budget):
    """Biggest row tile that fits the VMEM budget (double-buffering included)."""
    if M <= 256:
        return M                               # single/near-single block, full rows
    for tm in (1024, 512, 256):
        if tm <= M and fixed_bytes + tm * row_bytes <= budget:
            return tm
    return 256


# ---------------------------------------------------------------------------
# Kernel 1: fused Q/K/V input projections (row-tiled over batch*seq)
# ---------------------------------------------------------------------------
def qkv_proj_kernel(q_ref, k_ref, v_ref,
                    wq_ref, bq_ref, wk_ref, bk_ref, wv_ref, bv_ref,
                    qp_ref, kp_ref, vp_ref):
    def proj(x_ref, w_ref, b_ref):
        x = x_ref[...].astype(jnp.bfloat16)                  # bf16 MXU operands
        y = jnp.dot(x, w_ref[...], preferred_element_type=jnp.float32)
        return y + b_ref[...]                                # bias added in f32

    qp_ref[...] = proj(q_ref, wq_ref, bq_ref).astype(qp_ref.dtype)
    kp_ref[...] = proj(k_ref, wk_ref, bk_ref).astype(kp_ref.dtype)
    vp_ref[...] = proj(v_ref, wv_ref, bv_ref).astype(vp_ref.dtype)
    # TODO(synk): for d_model >= 2048 on v7x, add an output-column grid axis so the
    # (D, H*d_k) weights are tiled instead of kept fully resident in VMEM.


# ---------------------------------------------------------------------------
# Kernel 2: flash-style attention, all heads of one batch per grid step
#   grid = (B, num_q_tiles, num_kv_tiles);  kv axis is the online-softmax loop.
# ---------------------------------------------------------------------------
def flash_attention_kernel(q_ref, k_ref, v_ref, bias_ref, o_ref,
                           m_sc, l_sc, acc_sc, *,
                           num_heads, d_k, d_v, kv_tile, seq_len, needs_kv_mask):
    kv = pl.program_id(2)

    @pl.when(kv == 0)
    def _():
        m_sc[...] = jnp.full_like(m_sc, -jnp.inf)
        l_sc[...] = jnp.zeros_like(l_sc)
        acc_sc[...] = jnp.zeros_like(acc_sc)

    bias = bias_ref[...].astype(jnp.float32)                 # (tq, kv_tile)
    if needs_kv_mask:                                        # ragged last KV tile
        col = kv * kv_tile + jax.lax.broadcasted_iota(jnp.int32, bias.shape, 1)
        bias = jnp.where(col < seq_len, bias, jnp.float32(OOB_FILL))

    q = q_ref[...]                                           # (tq, H*d_k) bf16 (pre-scaled)
    k = k_ref[...]                                           # (tkv, H*d_k) bf16
    v = v_ref[...]                                           # (tkv, H*d_v) bf16
    m_prev = m_sc[...]                                       # (tq, H) f32
    l_prev = l_sc[...]
    acc_prev = acc_sc[...]                                   # (tq, H*d_v) f32

    new_m, new_l, new_acc = [], [], []
    for h in range(num_heads):                               # static unroll over heads
        qh = q[:, h * d_k:(h + 1) * d_k]
        kh = k[:, h * d_k:(h + 1) * d_k]
        vh = v[:, h * d_v:(h + 1) * d_v]
        s = jax.lax.dot_general(qh, kh, (((1,), (1,)), ((), ())),
                                preferred_element_type=jnp.float32)  # (tq, tkv)
        s = s + bias
        mh_prev = m_prev[:, h:h + 1]
        mh = jnp.maximum(mh_prev, jnp.max(s, axis=-1, keepdims=True))
        alpha = jnp.exp(mh_prev - mh)
        p = jnp.exp(s - mh)
        new_m.append(mh)
        new_l.append(alpha * l_prev[:, h:h + 1] + jnp.sum(p, axis=-1, keepdims=True))
        acc_h = acc_prev[:, h * d_v:(h + 1) * d_v]
        new_acc.append(alpha * acc_h
                       + jnp.dot(p.astype(jnp.bfloat16), vh,
                                 preferred_element_type=jnp.float32))

    m_sc[...] = jnp.concatenate(new_m, axis=1)
    l_sc[...] = jnp.concatenate(new_l, axis=1)
    acc_sc[...] = jnp.concatenate(new_acc, axis=1)           # lane-dense scratch store

    @pl.when(kv == pl.num_programs(2) - 1)
    def _():
        inv_l = pl.reciprocal(l_sc[...], approx=False)       # exact, tiny (tq, H) tile
        acc = acc_sc[...]
        outs = [acc[:, h * d_v:(h + 1) * d_v] * inv_l[:, h:h + 1]
                for h in range(num_heads)]
        o_ref[...] = jnp.concatenate(outs, axis=1).astype(o_ref.dtype)


# ---------------------------------------------------------------------------
# Kernel 3: output projection + residual + LayerNorm (row-tiled)
# ---------------------------------------------------------------------------
def out_proj_ln_kernel(ctx_ref, res_ref, wo_ref, bo_ref, gamma_ref, beta_ref, o_ref):
    y = jnp.dot(ctx_ref[...], wo_ref[...], preferred_element_type=jnp.float32)
    y = y + bo_ref[...]
    z = res_ref[...].astype(jnp.float32) + y                 # residual in original f32
    mean = jnp.mean(z, axis=-1, keepdims=True)
    c = z - mean
    var = jnp.mean(c * c, axis=-1, keepdims=True)
    zn = c * jax.lax.rsqrt(var + LN_EPS)
    o_ref[...] = (zn * gamma_ref[...] + beta_ref[...]).astype(o_ref.dtype)


# ---------------------------------------------------------------------------
# Wrapper
# ---------------------------------------------------------------------------
@functools.partial(jax.jit, static_argnames=("num_heads", "d_k", "d_v"))
def multi_head_attention(Q, K, V, attn_mask,
                         wq, bq, wk, bk, wv, bv, wo, bo, gamma, beta,
                         *, num_heads, d_k, d_v):
    """Q, K, V: [batch, seq, d_model] f32; attn_mask: [batch, seq, seq] bool."""
    B, S, D = Q.shape
    H = num_heads
    hk, hv = H * d_k, H * d_v
    M = B * S
    budget = _vmem_budget_bytes()
    bf = jnp.bfloat16

    q2d = Q.reshape(M, D)
    k2d = K.reshape(M, D)
    v2d = V.reshape(M, D)

    # bf16 matmul operands; fold the 1/sqrt(d_k) score scale into W_Q / b_Q (free).
    scale = 1.0 / math.sqrt(d_k)
    wq_b = (wq * scale).astype(bf)
    bq_s = (bq * scale).astype(jnp.float32)
    wk_b, wv_b, wo_b = wk.astype(bf), wv.astype(bf), wo.astype(bf)

    # ---- Kernel 1: Q/K/V projections ---------------------------------------
    w1_bytes = (2 * D * hk + D * hv) * 2 + (2 * hk + hv) * 4
    row1 = 2 * (3 * D * 4) + 2 * (2 * hk + hv) * 2
    fixed1 = 2 * w1_bytes + (4 << 20)
    tm1 = _pick_row_tile(M, row1, fixed1, budget)
    row_map1 = lambda i: (i, 0)
    full1 = lambda i: (0, 0)

    qp, kp, vp = pl.pallas_call(
        qkv_proj_kernel,
        out_shape=(jax.ShapeDtypeStruct((M, hk), bf),
                   jax.ShapeDtypeStruct((M, hk), bf),
                   jax.ShapeDtypeStruct((M, hv), bf)),
        grid_spec=pltpu.PrefetchScalarGridSpec(
            num_scalar_prefetch=0,
            grid=(pl.cdiv(M, tm1),),
            in_specs=[
                pl.BlockSpec((tm1, D), row_map1),
                pl.BlockSpec((tm1, D), row_map1),
                pl.BlockSpec((tm1, D), row_map1),
                pl.BlockSpec((D, hk), full1),
                pl.BlockSpec((1, hk), full1),
                pl.BlockSpec((D, hk), full1),
                pl.BlockSpec((1, hk), full1),
                pl.BlockSpec((D, hv), full1),
                pl.BlockSpec((1, hv), full1),
            ],
            out_specs=(pl.BlockSpec((tm1, hk), row_map1),
                       pl.BlockSpec((tm1, hk), row_map1),
                       pl.BlockSpec((tm1, hv), row_map1)),
        ),
        compiler_params=pltpu.CompilerParams(
            dimension_semantics=("parallel",),
            vmem_limit_bytes=_clamp_limit(fixed1 + tm1 * row1, budget),
        ),
    )(q2d, k2d, v2d,
      wq_b, bq_s.reshape(1, hk), wk_b, bk.reshape(1, hk), wv_b, bv.reshape(1, hv))

    # Head-packed layouts (free reshapes; no transposes touch HBM).
    q_p = qp.reshape(B, S, hk)
    k_p = kp.reshape(B, S, hk)
    v_p = vp.reshape(B, S, hv)

    # Additive mask bias (bf16): 0 where attended, -1e9 where masked.
    bias = jnp.where(attn_mask, jnp.float32(MASK_FILL), jnp.float32(0.0)).astype(bf)

    # ---- Kernel 2: flash attention over (batch, q-tile, kv-tile) -----------
    tq = S if S <= 256 else 256
    kv_tile = S if S <= 512 else 512
    nq = pl.cdiv(S, tq)
    nkv = pl.cdiv(S, kv_tile)
    needs_kv_mask = (S % kv_tile) != 0

    attn_bytes = (2 * (tq * hk * 2 + kv_tile * hk * 2 + kv_tile * hv * 2
                       + tq * kv_tile * 2)                       # dbl-buffered inputs
                  + 2 * tq * hv * 2                              # output block
                  + tq * hv * 4 + 2 * tq * H * 4                 # f32 scratch
                  + 2 * tq * kv_tile * 4                         # live s / p temporaries
                  + (4 << 20))

    ctx = pl.pallas_call(
        functools.partial(flash_attention_kernel,
                          num_heads=H, d_k=d_k, d_v=d_v,
                          kv_tile=kv_tile, seq_len=S, needs_kv_mask=needs_kv_mask),
        out_shape=jax.ShapeDtypeStruct((B, S, hv), bf),
        grid_spec=pltpu.PrefetchScalarGridSpec(
            num_scalar_prefetch=0,
            grid=(B, nq, nkv),
            in_specs=[
                pl.BlockSpec((None, tq, hk), lambda b, qi, ki: (b, qi, 0)),
                pl.BlockSpec((None, kv_tile, hk), lambda b, qi, ki: (b, ki, 0)),
                pl.BlockSpec((None, kv_tile, hv), lambda b, qi, ki: (b, ki, 0)),
                pl.BlockSpec((None, tq, kv_tile), lambda b, qi, ki: (b, qi, ki)),
            ],
            out_specs=pl.BlockSpec((None, tq, hv), lambda b, qi, ki: (b, qi, 0)),
            scratch_shapes=[pltpu.VMEM((tq, H), jnp.float32),     # running max
                            pltpu.VMEM((tq, H), jnp.float32),     # running sum
                            pltpu.VMEM((tq, hv), jnp.float32)],   # f32 accumulator
        ),
        compiler_params=pltpu.CompilerParams(
            dimension_semantics=("parallel", "parallel", "arbitrary"),
            vmem_limit_bytes=_clamp_limit(attn_bytes, budget),
        ),
    )(q_p, k_p, v_p, bias)

    ctx2d = ctx.reshape(M, hv)                                   # free (head-contiguous)

    # ---- Kernel 3: output projection + residual + LayerNorm ----------------
    w3_bytes = hv * D * 2 + 3 * D * 4
    row3 = 2 * (hv * 2 + D * 4) + 2 * D * 4
    fixed3 = 2 * w3_bytes + (4 << 20)
    tm3 = _pick_row_tile(M, row3, fixed3, budget)
    row_map3 = lambda i: (i, 0)
    full3 = lambda i: (0, 0)

    out2d = pl.pallas_call(
        out_proj_ln_kernel,
        out_shape=jax.ShapeDtypeStruct((M, D), Q.dtype),
        grid_spec=pltpu.PrefetchScalarGridSpec(
            num_scalar_prefetch=0,
            grid=(pl.cdiv(M, tm3),),
            in_specs=[
                pl.BlockSpec((tm3, hv), row_map3),
                pl.BlockSpec((tm3, D), row_map3),
                pl.BlockSpec((hv, D), full3),
                pl.BlockSpec((1, D), full3),
                pl.BlockSpec((1, D), full3),
                pl.BlockSpec((1, D), full3),
            ],
            out_specs=pl.BlockSpec((tm3, D), row_map3),
        ),
        compiler_params=pltpu.CompilerParams(
            dimension_semantics=("parallel",),
            vmem_limit_bytes=_clamp_limit(fixed3 + tm3 * row3, budget),
        ),
    )(ctx2d, q2d, wo_b, bo.reshape(1, D), gamma.reshape(1, D), beta.reshape(1, D))

    return out2d.reshape(B, S, D)


# ---------------------------------------------------------------------------
# Parameter init (mimics PyTorch nn.Linear / nn.LayerNorm defaults)
# ---------------------------------------------------------------------------
def init_params(key, d_model, d_k, d_v, num_heads):
    ks = jax.random.split(key, 8)

    def linear(kw, kb, fan_in, fan_out):
        lim = 1.0 / math.sqrt(fan_in)
        w = jax.random.uniform(kw, (fan_in, fan_out), jnp.float32, -lim, lim)
        b = jax.random.uniform(kb, (fan_out,), jnp.float32, -lim, lim)
        return w, b

    wq, bq = linear(ks[0], ks[1], d_model, num_heads * d_k)
    wk, bk = linear(ks[2], ks[3], d_model, num_heads * d_k)
    wv, bv = linear(ks[4], ks[5], d_model, num_heads * d_v)
    wo, bo = linear(ks[6], ks[7], num_heads * d_v, d_model)
    gamma = jnp.ones((d_model,), jnp.float32)
    beta = jnp.zeros((d_model,), jnp.float32)
    return wq, bq, wk, bk, wv, bv, wo, bo, gamma, beta


def reference(Q, K, V, attn_mask, wq, bq, wk, bk, wv, bv, wo, bo, gamma, beta,
              *, num_heads, d_k, d_v):
    B, S, D = Q.shape
    H = num_heads
    q_s = (Q @ wq + bq).reshape(B, S, H, d_k).transpose(0, 2, 1, 3)
    k_s = (K @ wk + bk).reshape(B, S, H, d_k).transpose(0, 2, 1, 3)
    v_s = (V @ wv + bv).reshape(B, S, H, d_v).transpose(0, 2, 1, 3)
    scores = jnp.einsum("bhqd,bhkd->bhqk", q_s, k_s) / math.sqrt(d_k)
    scores = jnp.where(attn_mask[:, None, :, :], MASK_FILL, scores)
    attn = jax.nn.softmax(scores, axis=-1)
    ctx = jnp.einsum("bhqk,bhkd->bhqd", attn, v_s)
    ctx = ctx.transpose(0, 2, 1, 3).reshape(B, S, H * d_v)
    out = ctx @ wo + bo
    z = out + Q
    mean = jnp.mean(z, axis=-1, keepdims=True)
    var = jnp.mean((z - mean) ** 2, axis=-1, keepdims=True)
    return (z - mean) / jnp.sqrt(var + LN_EPS) * gamma + beta


if __name__ == "__main__":
    batch, seq, d_model = 2, 8, 32
    num_heads, d_k, d_v = 4, 16, 16

    key = jax.random.PRNGKey(0)
    kq, kk, kv, kp = jax.random.split(key, 4)
    Q = jax.random.normal(kq, (batch, seq, d_model), jnp.float32)
    K = jax.random.normal(kk, (batch, seq, d_model), jnp.float32)
    V = jax.random.normal(kv, (batch, seq, d_model), jnp.float32)

    # Padding-style mask: batch 0 attends to all 8 keys, batch 1 only to the first 6.
    lengths = jnp.array([seq, seq - 2])
    key_pos = jnp.arange(seq)
    attn_mask = jnp.broadcast_to(
        key_pos[None, None, :] >= lengths[:, None, None], (batch, seq, seq))

    params = init_params(kp, d_model, d_k, d_v, num_heads)

    out = multi_head_attention(Q, K, V, attn_mask, *params,
                               num_heads=num_heads, d_k=d_k, d_v=d_v)
    out = jax.block_until_ready(out)

    ref = reference(Q, K, V, attn_mask, *params,
                    num_heads=num_heads, d_k=d_k, d_v=d_v)
    assert out.shape == Q.shape and out.dtype == Q.dtype
    max_err = float(jnp.max(jnp.abs(out - ref)))
    # bf16 matmul operands vs the f32 reference -> loose elementwise tolerance.
    assert max_err < 5e-2, f"mismatch vs reference: max abs err {max_err}"

    print("KERNEL_OK")
</pallas_src>

<mosaic_0001>
module attributes {stable_mosaic.version = 11 : i64} {
  func.func @qkv_proj_kernel(%arg0: i32, %arg1: memref<16x32xf32, #tpu.memory_space<vmem>>, %arg2: memref<16x32xf32, #tpu.memory_space<vmem>>, %arg3: memref<16x32xf32, #tpu.memory_space<vmem>>, %arg4: memref<32x64xbf16, #tpu.memory_space<vmem>>, %arg5: memref<1x64xf32, #tpu.memory_space<vmem>>, %arg6: memref<32x64xbf16, #tpu.memory_space<vmem>>, %arg7: memref<1x64xf32, #tpu.memory_space<vmem>>, %arg8: memref<32x64xbf16, #tpu.memory_space<vmem>>, %arg9: memref<1x64xf32, #tpu.memory_space<vmem>>, %arg10: memref<16x64xbf16, #tpu.memory_space<vmem>>, %arg11: memref<16x64xbf16, #tpu.memory_space<vmem>>, %arg12: memref<16x64xbf16, #tpu.memory_space<vmem>>) attributes {dimension_semantics = [#tpu.dimension_semantics<parallel>], iteration_bounds = array<i64: 1>, scalar_prefetch = 0 : i64, scratch_operands = 0 : i64, tpu.core_type = #tpu.core_type<tc>, window_params = [{transform_indices = @transform_0, window_bounds = array<i64: 16, 32>}, {transform_indices = @transform_1, window_bounds = array<i64: 16, 32>}, {transform_indices = @transform_2, window_bounds = array<i64: 16, 32>}, {pipeline_mode = #tpu.pipeline_mode<synchronous>, transform_indices = @transform_3, window_bounds = array<i64: 32, 64>}, {pipeline_mode = #tpu.pipeline_mode<synchronous>, transform_indices = @transform_4, window_bounds = array<i64: 1, 64>}, {pipeline_mode = #tpu.pipeline_mode<synchronous>, transform_indices = @transform_5, window_bounds = array<i64: 32, 64>}, {pipeline_mode = #tpu.pipeline_mode<synchronous>, transform_indices = @transform_6, window_bounds = array<i64: 1, 64>}, {pipeline_mode = #tpu.pipeline_mode<synchronous>, transform_indices = @transform_7, window_bounds = array<i64: 32, 64>}, {pipeline_mode = #tpu.pipeline_mode<synchronous>, transform_indices = @transform_8, window_bounds = array<i64: 1, 64>}, {transform_indices = @transform_9, window_bounds = array<i64: 16, 64>}, {transform_indices = @transform_10, window_bounds = array<i64: 16, 64>}, {transform_indices = @transform_11, window_bounds = array<i64: 16, 64>}]} {
    %c0 = arith.constant 0 : index
    %c0_0 = arith.constant 0 : index
    %0 = vector.load %arg1[%c0, %c0_0] : memref<16x32xf32, #tpu.memory_space<vmem>>, vector<16x32xf32>
    %1 = arith.truncf %0 : vector<16x32xf32> to vector<16x32xbf16>
    %c0_1 = arith.constant 0 : index
    %c0_2 = arith.constant 0 : index
    %2 = vector.load %arg4[%c0_1, %c0_2] : memref<32x64xbf16, #tpu.memory_space<vmem>>, vector<32x64xbf16>
    %cst = arith.constant dense<0.000000e+00> : vector<16x64xf32>
    %3 = tpu.matmul %1, %2, %cst {dimension_numbers = #tpu.dot_dimension_numbers<[1], [0], [0], [1], [0, 0, 1, 1], [], []>} : vector<16x32xbf16>, vector<32x64xbf16>, vector<16x64xf32> -> vector<16x64xf32>
    %c0_3 = arith.constant 0 : index
    %c0_4 = arith.constant 0 : index
    %4 = vector.load %arg5[%c0_3, %c0_4] : memref<1x64xf32, #tpu.memory_space<vmem>>, vector<1x64xf32>
    %5 = vector.broadcast %4 : vector<1x64xf32> to vector<16x64xf32>
    %6 = arith.addf %3, %5 : vector<16x64xf32>
    %7 = arith.truncf %6 : vector<16x64xf32> to vector<16x64xbf16>
    %c0_5 = arith.constant 0 : index
    %c0_6 = arith.constant 0 : index
    %8 = vector.load %arg10[%c0_5, %c0_6] : memref<16x64xbf16, #tpu.memory_space<vmem>>, vector<16x64xbf16>
    tpu.vector_store %arg10[%c0_5, %c0_6], %7 {strides = array<i32>} : memref<16x64xbf16, #tpu.memory_space<vmem>>, vector<16x64xbf16>,
    %c0_7 = arith.constant 0 : index
    %c0_8 = arith.constant 0 : index
    %9 = vector.load %arg2[%c0_7, %c0_8] : memref<16x32xf32, #tpu.memory_space<vmem>>, vector<16x32xf32>
    %10 = arith.truncf %9 : vector<16x32xf32> to vector<16x32xbf16>
    %c0_9 = arith.constant 0 : index
    %c0_10 = arith.constant 0 : index
    %11 = vector.load %arg6[%c0_9, %c0_10] : memref<32x64xbf16, #tpu.memory_space<vmem>>, vector<32x64xbf16>
    %cst_11 = arith.constant dense<0.000000e+00> : vector<16x64xf32>
    %12 = tpu.matmul %10, %11, %cst_11 {dimension_numbers = #tpu.dot_dimension_numbers<[1], [0], [0], [1], [0, 0, 1, 1], [], []>} : vector<16x32xbf16>, vector<32x64xbf16>, vector<16x64xf32> -> vector<16x64xf32>
    %c0_12 = arith.constant 0 : index
    %c0_13 = arith.constant 0 : index
    %13 = vector.load %arg7[%c0_12, %c0_13] : memref<1x64xf32, #tpu.memory_space<vmem>>, vector<1x64xf32>
    %14 = vector.broadcast %13 : vector<1x64xf32> to vector<16x64xf32>
    %15 = arith.addf %12, %14 : vector<16x64xf32>
    %16 = arith.truncf %15 : vector<16x64xf32> to vector<16x64xbf16>
    %c0_14 = arith.constant 0 : index
    %c0_15 = arith.constant 0 : index
    %17 = vector.load %arg11[%c0_14, %c0_15] : memref<16x64xbf16, #tpu.memory_space<vmem>>, vector<16x64xbf16>
    tpu.vector_store %arg11[%c0_14, %c0_15], %16 {strides = array<i32>} : memref<16x64xbf16, #tpu.memory_space<vmem>>, vector<16x64xbf16>,
    %c0_16 = arith.constant 0 : index
    %c0_17 = arith.constant 0 : index
    %18 = vector.load %arg3[%c0_16, %c0_17] : memref<16x32xf32, #tpu.memory_space<vmem>>, vector<16x32xf32>
    %19 = arith.truncf %18 : vector<16x32xf32> to vector<16x32xbf16>
    %c0_18 = arith.constant 0 : index
    %c0_19 = arith.constant 0 : index
    %20 = vector.load %arg8[%c0_18, %c0_19] : memref<32x64xbf16, #tpu.memory_space<vmem>>, vector<32x64xbf16>
    %cst_20 = arith.constant dense<0.000000e+00> : vector<16x64xf32>
    %21 = tpu.matmul %19, %20, %cst_20 {dimension_numbers = #tpu.dot_dimension_numbers<[1], [0], [0], [1], [0, 0, 1, 1], [], []>} : vector<16x32xbf16>, vector<32x64xbf16>, vector<16x64xf32> -> vector<16x64xf32>
    %c0_21 = arith.constant 0 : index
    %c0_22 = arith.constant 0 : index
    %22 = vector.load %arg9[%c0_21, %c0_22] : memref<1x64xf32, #tpu.memory_space<vmem>>, vector<1x64xf32>
    %23 = vector.broadcast %22 : vector<1x64xf32> to vector<16x64xf32>
    %24 = arith.addf %21, %23 : vector<16x64xf32>
    %25 = arith.truncf %24 : vector<16x64xf32> to vector<16x64xbf16>
    %c0_23 = arith.constant 0 : index
    %c0_24 = arith.constant 0 : index
    %26 = vector.load %arg12[%c0_23, %c0_24] : memref<16x64xbf16, #tpu.memory_space<vmem>>, vector<16x64xbf16>
    tpu.vector_store %arg12[%c0_23, %c0_24], %25 {strides = array<i32>} : memref<16x64xbf16, #tpu.memory_space<vmem>>, vector<16x64xbf16>,
    return
  }
  func.func @transform_0(%arg0: i32) -> (i32, i32) {
    %c0_i32 = arith.constant 0 : i32
    %c0_i32_0 = arith.constant 0 : i32
    return %arg0, %c0_i32 : i32, i32
  }
  func.func @transform_1(%arg0: i32) -> (i32, i32) {
    %c0_i32 = arith.constant 0 : i32
    %c0_i32_0 = arith.constant 0 : i32
    return %arg0, %c0_i32 : i32, i32
  }
  func.func @transform_2(%arg0: i32) -> (i32, i32) {
    %c0_i32 = arith.constant 0 : i32
    %c0_i32_0 = arith.constant 0 : i32
    return %arg0, %c0_i32 : i32, i32
  }
  func.func @transform_3(%arg0: i32) -> (i32, i32) {
    %c0_i32 = arith.constant 0 : i32
    %c0_i32_0 = arith.constant 0 : i32
    %c0_i32_1 = arith.constant 0 : i32
    return %c0_i32, %c0_i32_0 : i32, i32
  }
  func.func @transform_4(%arg0: i32) -> (i32, i32) {
    %c0_i32 = arith.constant 0 : i32
    %c0_i32_0 = arith.constant 0 : i32
    %c0_i32_1 = arith.constant 0 : i32
    return %c0_i32, %c0_i32_0 : i32, i32
  }
  func.func @transform_5(%arg0: i32) -> (i32, i32) {
    %c0_i32 = arith.constant 0 : i32
    %c0_i32_0 = arith.constant 0 : i32
    %c0_i32_1 = arith.constant 0 : i32
    return %c0_i32, %c0_i32_0 : i32, i32
  }
  func.func @transform_6(%arg0: i32) -> (i32, i32) {
    %c0_i32 = arith.constant 0 : i32
    %c0_i32_0 = arith.constant 0 : i32
    %c0_i32_1 = arith.constant 0 : i32
    return %c0_i32, %c0_i32_0 : i32, i32
  }
  func.func @transform_7(%arg0: i32) -> (i32, i32) {
    %c0_i32 = arith.constant 0 : i32
    %c0_i32_0 = arith.constant 0 : i32
    %c0_i32_1 = arith.constant 0 : i32
    return %c0_i32, %c0_i32_0 : i32, i32
  }
  func.func @transform_8(%arg0: i32) -> (i32, i32) {
    %c0_i32 = arith.constant 0 : i32
    %c0_i32_0 = arith.constant 0 : i32
    %c0_i32_1 = arith.constant 0 : i32
    return %c0_i32, %c0_i32_0 : i32, i32
  }
  func.func @transform_9(%arg0: i32) -> (i32, i32) {
    %c0_i32 = arith.constant 0 : i32
    %c0_i32_0 = arith.constant 0 : i32
    return %arg0, %c0_i32 : i32, i32
  }
  func.func @transform_10(%arg0: i32) -> (i32, i32) {
    %c0_i32 = arith.constant 0 : i32
    %c0_i32_0 = arith.constant 0 : i32
    return %arg0, %c0_i32 : i32, i32
  }
  func.func @transform_11(%arg0: i32) -> (i32, i32) {
    %c0_i32 = arith.constant 0 : i32
    %c0_i32_0 = arith.constant 0 : i32
    return %arg0, %c0_i32 : i32, i32
  }
}

module attributes {stable_mosaic.version = 11 : i64} {
  func.func @flash_attention_kernel(%arg0: i32, %arg1: i32, %arg2: i32, %arg3: memref<1x8x64xbf16, #tpu.memory_space<vmem>>, %arg4: memref<1x8x64xbf16, #tpu.memory_space<vmem>>, %arg5: memref<1x8x64xbf16, #tpu.memory_space<vmem>>, %arg6: memref<1x8x8xbf16, #tpu.memory_space<vmem>>, %arg7: memref<1x8x64xbf16, #tpu.memory_space<vmem>>, %arg8: memref<8x4xf32, #tpu.memory_space<vmem>>, %arg9: memref<8x4xf32, #tpu.memory_space<vmem>>, %arg10: memref<8x64xf32, #tpu.memory_space<vmem>>) attributes {dimension_semantics = [#tpu.dimension_semantics<parallel>, #tpu.dimension_semantics<parallel>, #tpu.dimension_semantics<arbitrary>], iteration_bounds = array<i64: 2, 1, 1>, scalar_prefetch = 0 : i64, scratch_operands = 3 : i64, tpu.core_type = #tpu.core_type<tc>, window_params = [{transform_indices = @transform_0, window_bounds = array<i64: 1, 8, 64>}, {transform_indices = @transform_1, window_bounds = array<i64: 1, 8, 64>}, {transform_indices = @transform_2, window_bounds = array<i64: 1, 8, 64>}, {transform_indices = @transform_3, window_bounds = array<i64: 1, 8, 8>}, {transform_indices = @transform_4, window_bounds = array<i64: 1, 8, 64>}]} {
    %c0_i32 = arith.constant 0 : i32
    %0 = arith.cmpi eq, %arg2, %c0_i32 : i32
    %1 = arith.extui %0 : i1 to i32
    %c0_i32_0 = arith.constant 0 : i32
    %2 = arith.cmpi ne, %1, %c0_i32_0 : i32
    scf.if %2 {
      %cst_41 = arith.constant 0xFF800000 : f32
      %124 = vector.broadcast %cst_41 : f32 to vector<8x4xf32>
      %c0_42 = arith.constant 0 : index
      %c0_43 = arith.constant 0 : index
      %125 = vector.load %arg8[%c0_42, %c0_43] : memref<8x4xf32, #tpu.memory_space<vmem>>, vector<8x4xf32>
      tpu.vector_store %arg8[%c0_42, %c0_43], %124 {strides = array<i32>} : memref<8x4xf32, #tpu.memory_space<vmem>>, vector<8x4xf32>,
      %cst_44 = arith.constant 0.000000e+00 : f32
      %126 = vector.broadcast %cst_44 : f32 to vector<8x4xf32>
      %c0_45 = arith.constant 0 : index
      %c0_46 = arith.constant 0 : index
      %127 = vector.load %arg9[%c0_45, %c0_46] : memref<8x4xf32, #tpu.memory_space<vmem>>, vector<8x4xf32>
      tpu.vector_store %arg9[%c0_45, %c0_46], %126 {strides = array<i32>} : memref<8x4xf32, #tpu.memory_space<vmem>>, vector<8x4xf32>,
      %cst_47 = arith.constant 0.000000e+00 : f32
      %128 = vector.broadcast %cst_47 : f32 to vector<8x64xf32>
      %c0_48 = arith.constant 0 : index
      %c0_49 = arith.constant 0 : index
      %129 = vector.load %arg10[%c0_48, %c0_49] : memref<8x64xf32, #tpu.memory_space<vmem>>, vector<8x64xf32>
      tpu.vector_store %arg10[%c0_48, %c0_49], %128 {strides = array<i32>} : memref<8x64xf32, #tpu.memory_space<vmem>>, vector<8x64xf32>,
    } else {
    }
    %c0 = arith.constant 0 : index
    %c0_1 = arith.constant 0 : index
    %c0_2 = arith.constant 0 : index
    %3 = vector.load %arg6[%c0, %c0_1, %c0_2] : memref<1x8x8xbf16, #tpu.memory_space<vmem>>, vector<1x8x8xbf16>
    %4 = vector.shape_cast %3 : vector<1x8x8xbf16> to vector<8x8xbf16>
    %5 = arith.extf %4 : vector<8x8xbf16> to vector<8x8xf32>
    %c0_3 = arith.constant 0 : index
    %c0_4 = arith.constant 0 : index
    %c0_5 = arith.constant 0 : index
    %6 = vector.load %arg3[%c0_3, %c0_4, %c0_5] : memref<1x8x64xbf16, #tpu.memory_space<vmem>>, vector<1x8x64xbf16>
    %7 = vector.shape_cast %6 : vector<1x8x64xbf16> to vector<8x64xbf16>
    %c0_6 = arith.constant 0 : index
    %c0_7 = arith.constant 0 : index
    %c0_8 = arith.constant 0 : index
    %8 = vector.load %arg4[%c0_6, %c0_7, %c0_8] : memref<1x8x64xbf16, #tpu.memory_space<vmem>>, vector<1x8x64xbf16>
    %9 = vector.shape_cast %8 : vector<1x8x64xbf16> to vector<8x64xbf16>
    %c0_9 = arith.constant 0 : index
    %c0_10 = arith.constant 0 : index
    %c0_11 = arith.constant 0 : index
    %10 = vector.load %arg5[%c0_9, %c0_10, %c0_11] : memref<1x8x64xbf16, #tpu.memory_space<vmem>>, vector<1x8x64xbf16>
    %11 = vector.shape_cast %10 : vector<1x8x64xbf16> to vector<8x64xbf16>
    %c0_12 = arith.constant 0 : index
    %c0_13 = arith.constant 0 : index
    %12 = vector.load %arg8[%c0_12, %c0_13] : memref<8x4xf32, #tpu.memory_space<vmem>>, vector<8x4xf32>
    %c0_14 = arith.constant 0 : index
    %c0_15 = arith.constant 0 : index
    %13 = vector.load %arg9[%c0_14, %c0_15] : memref<8x4xf32, #tpu.memory_space<vmem>>, vector<8x4xf32>
    %c0_16 = arith.constant 0 : index
    %c0_17 = arith.constant 0 : index
    %14 = vector.load %arg10[%c0_16, %c0_17] : memref<8x64xf32, #tpu.memory_space<vmem>>, vector<8x64xf32>
    %15 = vector.extract_strided_slice %7 {offsets = [0, 0], sizes = [8, 16], strides = [1, 1]} : vector<8x64xbf16> to vector<8x16xbf16>
    %16 = vector.extract_strided_slice %9 {offsets = [0, 0], sizes = [8, 16], strides = [1, 1]} : vector<8x64xbf16> to vector<8x16xbf16>
    %17 = vector.extract_strided_slice %11 {offsets = [0, 0], sizes = [8, 16], strides = [1, 1]} : vector<8x64xbf16> to vector<8x16xbf16>
    %cst = arith.constant dense<0.000000e+00> : vector<8x8xf32>
    %18 = tpu.matmul %15, %16, %cst {dimension_numbers = #tpu.dot_dimension_numbers<[1], [1], [0], [0], [0, 0, 1, 0], [], []>} : vector<8x16xbf16>, vector<8x16xbf16>, vector<8x8xf32> -> vector<8x8xf32>
    %19 = arith.addf %18, %5 : vector<8x8xf32>
    %20 = vector.extract_strided_slice %12 {offsets = [0, 0], sizes = [8, 1], strides = [1, 1]} : vector<8x4xf32> to vector<8x1xf32>
    %cst_18 = arith.constant dense<0xFF800000> : vector<8xf32>
    %21 = vector.multi_reduction <maximumf>, %19, %cst_18 [1] : vector<8x8xf32> to vector<8xf32>
    %22 = vector.shape_cast %21 : vector<8xf32> to vector<8x1xf32>
    %23 = arith.maximumf %20, %22 : vector<8x1xf32>
    %24 = arith.subf %20, %23 : vector<8x1xf32>
    %25 = math.exp %24 : vector<8x1xf32>
    %26 = vector.broadcast %23 : vector<8x1xf32> to vector<8x8xf32>
    %27 = arith.subf %19, %26 : vector<8x8xf32>
    %28 = math.exp %27 : vector<8x8xf32>
    %29 = vector.extract_strided_slice %13 {offsets = [0, 0], sizes = [8, 1], strides = [1, 1]} : vector<8x4xf32> to vector<8x1xf32>
    %30 = arith.mulf %25, %29 : vector<8x1xf32>
    %cst_19 = arith.constant dense<0.000000e+00> : vector<8xf32>
    %31 = vector.multi_reduction <add>, %28, %cst_19 [1] : vector<8x8xf32> to vector<8xf32>
    %32 = vector.shape_cast %31 : vector<8xf32> to vector<8x1xf32>
    %33 = arith.addf %30, %32 : vector<8x1xf32>
    %34 = vector.extract_strided_slice %14 {offsets = [0, 0], sizes = [8, 16], strides = [1, 1]} : vector<8x64xf32> to vector<8x16xf32>
    %35 = vector.broadcast %25 : vector<8x1xf32> to vector<8x16xf32>
    %36 = arith.mulf %35, %34 : vector<8x16xf32>
    %37 = arith.truncf %28 : vector<8x8xf32> to vector<8x8xbf16>
    %cst_20 = arith.constant dense<0.000000e+00> : vector<8x16xf32>
    %38 = tpu.matmul %37, %17, %cst_20 {dimension_numbers = #tpu.dot_dimension_numbers<[1], [0], [0], [1], [0, 0, 1, 1], [], []>} : vector<8x8xbf16>, vector<8x16xbf16>, vector<8x16xf32> -> vector<8x16xf32>
    %39 = arith.addf %36, %38 : vector<8x16xf32>
    %40 = vector.extract_strided_slice %7 {offsets = [0, 16], sizes = [8, 16], strides = [1, 1]} : vector<8x64xbf16> to vector<8x16xbf16>
    %41 = vector.extract_strided_slice %9 {offsets = [0, 16], sizes = [8, 16], strides = [1, 1]} : vector<8x64xbf16> to vector<8x16xbf16>
    %42 = vector.extract_strided_slice %11 {offsets = [0, 16], sizes = [8, 16], strides = [1, 1]} : vector<8x64xbf16> to vector<8x16xbf16>
    %cst_21 = arith.constant dense<0.000000e+00> : vector<8x8xf32>
    %43 = tpu.matmul %40, %41, %cst_21 {dimension_numbers = #tpu.dot_dimension_numbers<[1], [1], [0], [0], [0, 0, 1, 0], [], []>} : vector<8x16xbf16>, vector<8x16xbf16>, vector<8x8xf32> -> vector<8x8xf32>
    %44 = arith.addf %43, %5 : vector<8x8xf32>
    %45 = vector.extract_strided_slice %12 {offsets = [0, 1], sizes = [8, 1], strides = [1, 1]} : vector<8x4xf32> to vector<8x1xf32>
    %cst_22 = arith.constant dense<0xFF800000> : vector<8xf32>
    %46 = vector.multi_reduction <maximumf>, %44, %cst_22 [1] : vector<8x8xf32> to vector<8xf32>
    %47 = vector.shape_cast %46 : vector<8xf32> to vector<8x1xf32>
    %48 = arith.maximumf %45, %47 : vector<8x1xf32>
    %49 = arith.subf %45, %48 : vector<8x1xf32>
    %50 = math.exp %49 : vector<8x1xf32>
    %51 = vector.broadcast %48 : vector<8x1xf32> to vector<8x8xf32>
    %52 = arith.subf %44, %51 : vector<8x8xf32>
    %53 = math.exp %52 : vector<8x8xf32>
    %54 = vector.extract_strided_slice %13 {offsets = [0, 1], sizes = [8, 1], strides = [1, 1]} : vector<8x4xf32> to vector<8x1xf32>
    %55 = arith.mulf %50, %54 : vector<8x1xf32>
    %cst_23 = arith.constant dense<0.000000e+00> : vector<8xf32>
    %56 = vector.multi_reduction <add>, %53, %cst_23 [1] : vector<8x8xf32> to vector<8xf32>
    %57 = vector.shape_cast %56 : vector<8xf32> to vector<8x1xf32>
    %58 = arith.addf %55, %57 : vector<8x1xf32>
    %59 = vector.extract_strided_slice %14 {offsets = [0, 16], sizes = [8, 16], strides = [1, 1]} : vector<8x64xf32> to vector<8x16xf32>
    %60 = vector.broadcast %50 : vector<8x1xf32> to vector<8x16xf32>
    %61 = arith.mulf %60, %59 : vector<8x16xf32>
    %62 = arith.truncf %53 : vector<8x8xf32> to vector<8x8xbf16>
    %cst_24 = arith.constant dense<0.000000e+00> : vector<8x16xf32>
    %63 = tpu.matmul %62, %42, %cst_24 {dimension_numbers = #tpu.dot_dimension_numbers<[1], [0], [0], [1], [0, 0, 1, 1], [], []>} : vector<8x8xbf16>, vector<8x16xbf16>, vector<8x16xf32> -> vector<8x16xf32>
    %64 = arith.addf %61, %63 : vector<8x16xf32>
    %65 = vector.extract_strided_slice %7 {offsets = [0, 32], sizes = [8, 16], strides = [1, 1]} : vector<8x64xbf16> to vector<8x16xbf16>
    %66 = vector.extract_strided_slice %9 {offsets = [0, 32], sizes = [8, 16], strides = [1, 1]} : vector<8x64xbf16> to vector<8x16xbf16>
    %67 = vector.extract_strided_slice %11 {offsets = [0, 32], sizes = [8, 16], strides = [1, 1]} : vector<8x64xbf16> to vector<8x16xbf16>
    %cst_25 = arith.constant dense<0.000000e+00> : vector<8x8xf32>
    %68 = tpu.matmul %65, %66, %cst_25 {dimension_numbers = #tpu.dot_dimension_numbers<[1], [1], [0], [0], [0, 0, 1, 0], [], []>} : vector<8x16xbf16>, vector<8x16xbf16>, vector<8x8xf32> -> vector<8x8xf32>
    %69 = arith.addf %68, %5 : vector<8x8xf32>
    %70 = vector.extract_strided_slice %12 {offsets = [0, 2], sizes = [8, 1], strides = [1, 1]} : vector<8x4xf32> to vector<8x1xf32>
    %cst_26 = arith.constant dense<0xFF800000> : vector<8xf32>
    %71 = vector.multi_reduction <maximumf>, %69, %cst_26 [1] : vector<8x8xf32> to vector<8xf32>
    %72 = vector.shape_cast %71 : vector<8xf32> to vector<8x1xf32>
    %73 = arith.maximumf %70, %72 : vector<8x1xf32>
    %74 = arith.subf %70, %73 : vector<8x1xf32>
    %75 = math.exp %74 : vector<8x1xf32>
    %76 = vector.broadcast %73 : vector<8x1xf32> to vector<8x8xf32>
    %77 = arith.subf %69, %76 : vector<8x8xf32>
    %78 = math.exp %77 : vector<8x8xf32>
    %79 = vector.extract_strided_slice %13 {offsets = [0, 2], sizes = [8, 1], strides = [1, 1]} : vector<8x4xf32> to vector<8x1xf32>
    %80 = arith.mulf %75, %79 : vector<8x1xf32>
    %cst_27 = arith.constant dense<0.000000e+00> : vector<8xf32>
    %81 = vector.multi_reduction <add>, %78, %cst_27 [1] : vector<8x8xf32> to vector<8xf32>
    %82 = vector.shape_cast %81 : vector<8xf32> to vector<8x1xf32>
    %83 = arith.addf %80, %82 : vector<8x1xf32>
    %84 = vector.extract_strided_slice %14 {offsets = [0, 32], sizes = [8, 16], strides = [1, 1]} : vector<8x64xf32> to vector<8x16xf32>
    %85 = vector.broadcast %75 : vector<8x1xf32> to vector<8x16xf32>
    %86 = arith.mulf %85, %84 : vector<8x16xf32>
    %87 = arith.truncf %78 : vector<8x8xf32> to vector<8x8xbf16>
    %cst_28 = arith.constant dense<0.000000e+00> : vector<8x16xf32>
    %88 = tpu.matmul %87, %67, %cst_28 {dimension_numbers = #tpu.dot_dimension_numbers<[1], [0], [0], [1], [0, 0, 1, 1], [], []>} : vector<8x8xbf16>, vector<8x16xbf16>, vector<8x16xf32> -> vector<8x16xf32>
    %89 = arith.addf %86, %88 : vector<8x16xf32>
    %90 = vector.extract_strided_slice %7 {offsets = [0, 48], sizes = [8, 16], strides = [1, 1]} : vector<8x64xbf16> to vector<8x16xbf16>
    %91 = vector.extract_strided_slice %9 {offsets = [0, 48], sizes = [8, 16], strides = [1, 1]} : vector<8x64xbf16> to vector<8x16xbf16>
    %92 = vector.extract_strided_slice %11 {offsets = [0, 48], sizes = [8, 16], strides = [1, 1]} : vector<8x64xbf16> to vector<8x16xbf16>
    %cst_29 = arith.constant dense<0.000000e+00> : vector<8x8xf32>
    %93 = tpu.matmul %90, %91, %cst_29 {dimension_numbers = #tpu.dot_dimension_numbers<[1], [1], [0], [0], [0, 0, 1, 0], [], []>} : vector<8x16xbf16>, vector<8x16xbf16>, vector<8x8xf32> -> vector<8x8xf32>
    %94 = arith.addf %93, %5 : vector<8x8xf32>
    %95 = vector.extract_strided_slice %12 {offsets = [0, 3], sizes = [8, 1], strides = [1, 1]} : vector<8x4xf32> to vector<8x1xf32>
    %cst_30 = arith.constant dense<0xFF800000> : vector<8xf32>
    %96 = vector.multi_reduction <maximumf>, %94, %cst_30 [1] : vector<8x8xf32> to vector<8xf32>
    %97 = vector.shape_cast %96 : vector<8xf32> to vector<8x1xf32>
    %98 = arith.maximumf %95, %97 : vector<8x1xf32>
    %99 = arith.subf %95, %98 : vector<8x1xf32>
    %100 = math.exp %99 : vector<8x1xf32>
    %101 = vector.broadcast %98 : vector<8x1xf32> to vector<8x8xf32>
    %102 = arith.subf %94, %101 : vector<8x8xf32>
    %103 = math.exp %102 : vector<8x8xf32>
    %104 = vector.extract_strided_slice %13 {offsets = [0, 3], sizes = [8, 1], strides = [1, 1]} : vector<8x4xf32> to vector<8x1xf32>
    %105 = arith.mulf %100, %104 : vector<8x1xf32>
    %cst_31 = arith.constant dense<0.000000e+00> : vector<8xf32>
    %106 = vector.multi_reduction <add>, %103, %cst_31 [1] : vector<8x8xf32> to vector<8xf32>
    %107 = vector.shape_cast %106 : vector<8xf32> to vector<8x1xf32>
    %108 = arith.addf %105, %107 : vector<8x1xf32>
    %109 = vector.extract_strided_slice %14 {offsets = [0, 48], sizes = [8, 16], strides = [1, 1]} : vector<8x64xf32> to vector<8x16xf32>
    %110 = vector.broadcast %100 : vector<8x1xf32> to vector<8x16xf32>
    %111 = arith.mulf %110, %109 : vector<8x16xf32>
    %112 = arith.truncf %103 : vector<8x8xf32> to vector<8x8xbf16>
    %cst_32 = arith.constant dense<0.000000e+00> : vector<8x16xf32>
    %113 = tpu.matmul %112, %92, %cst_32 {dimension_numbers = #tpu.dot_dimension_numbers<[1], [0], [0], [1], [0, 0, 1, 1], [], []>} : vector<8x8xbf16>, vector<8x16xbf16>, vector<8x16xf32> -> vector<8x16xf32>
    %114 = arith.addf %111, %113 : vector<8x16xf32>
    %115 = tpu.concatenate %23, %48, %73, %98 in 1 : vector<8x1xf32>, vector<8x1xf32>, vector<8x1xf32>, vector<8x1xf32> -> vector<8x4xf32>
    %c0_33 = arith.constant 0 : index
    %c0_34 = arith.constant 0 : index
    %116 = vector.load %arg8[%c0_33, %c0_34] : memref<8x4xf32, #tpu.memory_space<vmem>>, vector<8x4xf32>
    tpu.vector_store %arg8[%c0_33, %c0_34], %115 {strides = array<i32>} : memref<8x4xf32, #tpu.memory_space<vmem>>, vector<8x4xf32>,
    %117 = tpu.concatenate %33, %58, %83, %108 in 1 : vector<8x1xf32>, vector<8x1xf32>, vector<8x1xf32>, vector<8x1xf32> -> vector<8x4xf32>
    %c0_35 = arith.constant 0 : index
    %c0_36 = arith.constant 0 : index
    %118 = vector.load %arg9[%c0_35, %c0_36] : memref<8x4xf32, #tpu.memory_space<vmem>>, vector<8x4xf32>
    tpu.vector_store %arg9[%c0_35, %c0_36], %117 {strides = array<i32>} : memref<8x4xf32, #tpu.memory_space<vmem>>, vector<8x4xf32>,
    %119 = tpu.concatenate %39, %64, %89, %114 in 1 : vector<8x16xf32>, vector<8x16xf32>, vector<8x16xf32>, vector<8x16xf32> -> vector<8x64xf32>
    %c0_37 = arith.constant 0 : index
    %c0_38 = arith.constant 0 : index
    %120 = vector.load %arg10[%c0_37, %c0_38] : memref<8x64xf32, #tpu.memory_space<vmem>>, vector<8x64xf32>
    tpu.vector_store %arg10[%c0_37, %c0_38], %119 {strides = array<i32>} : memref<8x64xf32, #tpu.memory_space<vmem>>, vector<8x64xf32>,
    %c0_i32_39 = arith.constant 0 : i32
    %121 = arith.cmpi eq, %arg2, %c0_i32_39 : i32
    %122 = arith.extui %121 : i1 to i32
    %c0_i32_40 = arith.constant 0 : i32
    %123 = arith.cmpi ne, %122, %c0_i32_40 : i32
    scf.if %123 {
      %c0_41 = arith.constant 0 : index
      %c0_42 = arith.constant 0 : index
      %124 = vector.load %arg9[%c0_41, %c0_42] : memref<8x4xf32, #tpu.memory_space<vmem>>, vector<8x4xf32>
      %125 = tpu.reciprocal %124 : vector<8x4xf32> -> vector<8x4xf32>
      %c0_43 = arith.constant 0 : index
      %c0_44 = arith.constant 0 : index
      %126 = vector.load %arg10[%c0_43, %c0_44] : memref<8x64xf32, #tpu.memory_space<vmem>>, vector<8x64xf32>
      %127 = vector.extract_strided_slice %126 {offsets = [0, 0], sizes = [8, 16], strides = [1, 1]} : vector<8x64xf32> to vector<8x16xf32>
      %128 = vector.extract_strided_slice %125 {offsets = [0, 0], sizes = [8, 1], strides = [1, 1]} : vector<8x4xf32> to vector<8x1xf32>
      %129 = vector.broadcast %128 : vector<8x1xf32> to vector<8x16xf32>
      %130 = arith.mulf %127, %129 : vector<8x16xf32>
      %131 = vector.extract_strided_slice %126 {offsets = [0, 16], sizes = [8, 16], strides = [1, 1]} : vector<8x64xf32> to vector<8x16xf32>
      %132 = vector.extract_strided_slice %125 {offsets = [0, 1], sizes = [8, 1], strides = [1, 1]} : vector<8x4xf32> to vector<8x1xf32>
      %133 = vector.broadcast %132 : vector<8x1xf32> to vector<8x16xf32>
      %134 = arith.mulf %131, %133 : vector<8x16xf32>
      %135 = vector.extract_strided_slice %126 {offsets = [0, 32], sizes = [8, 16], strides = [1, 1]} : vector<8x64xf32> to vector<8x16xf32>
      %136 = vector.extract_strided_slice %125 {offsets = [0, 2], sizes = [8, 1], strides = [1, 1]} : vector<8x4xf32> to vector<8x1xf32>
      %137 = vector.broadcast %136 : vector<8x1xf32> to vector<8x16xf32>
      %138 = arith.mulf %135, %137 : vector<8x16xf32>
      %139 = vector.extract_strided_slice %126 {offsets = [0, 48], sizes = [8, 16], strides = [1, 1]} : vector<8x64xf32> to vector<8x16xf32>
      %140 = vector.extract_strided_slice %125 {offsets = [0, 3], sizes = [8, 1], strides = [1, 1]} : vector<8x4xf32> to vector<8x1xf32>
      %141 = vector.broadcast %140 : vector<8x1xf32> to vector<8x16xf32>
      %142 = arith.mulf %139, %141 : vector<8x16xf32>
      %143 = tpu.concatenate %130, %134, %138, %142 in 1 : vector<8x16xf32>, vector<8x16xf32>, vector<8x16xf32>, vector<8x16xf32> -> vector<8x64xf32>
      %144 = arith.truncf %143 : vector<8x64xf32> to vector<8x64xbf16>
      %c0_45 = arith.constant 0 : index
      %c0_46 = arith.constant 0 : index
      %c0_47 = arith.constant 0 : index
      %145 = vector.load %arg7[%c0_45, %c0_46, %c0_47] : memref<1x8x64xbf16, #tpu.memory_space<vmem>>, vector<1x8x64xbf16>
      %146 = vector.shape_cast %145 : vector<1x8x64xbf16> to vector<8x64xbf16>
      %147 = vector.shape_cast %144 : vector<8x64xbf16> to vector<1x8x64xbf16>
      tpu.vector_store %arg7[%c0_45, %c0_46, %c0_47], %147 {strides = array<i32>} : memref<1x8x64xbf16, #tpu.memory_space<vmem>>, vector<1x8x64xbf16>,
    } else {
    }
    return
  }
  func.func @transform_0(%arg0: i32, %arg1: i32, %arg2: i32) -> (i32, i32, i32) {
    %c0_i32 = arith.constant 0 : i32
    %c0_i32_0 = arith.constant 0 : i32
    return %arg0, %arg1, %c0_i32 : i32, i32, i32
  }
  func.func @transform_1(%arg0: i32, %arg1: i32, %arg2: i32) -> (i32, i32, i32) {
    %c0_i32 = arith.constant 0 : i32
    %c0_i32_0 = arith.constant 0 : i32
    return %arg0, %arg2, %c0_i32 : i32, i32, i32
  }
  func.func @transform_2(%arg0: i32, %arg1: i32, %arg2: i32) -> (i32, i32, i32) {
    %c0_i32 = arith.constant 0 : i32
    %c0_i32_0 = arith.constant 0 : i32
    return %arg0, %arg2, %c0_i32 : i32, i32, i32
  }
  func.func @transform_3(%arg0: i32, %arg1: i32, %arg2: i32) -> (i32, i32, i32) {
    %c0_i32 = arith.constant 0 : i32
    return %arg0, %arg1, %arg2 : i32, i32, i32
  }
  func.func @transform_4(%arg0: i32, %arg1: i32, %arg2: i32) -> (i32, i32, i32) {
    %c0_i32 = arith.constant 0 : i32
    %c0_i32_0 = arith.constant 0 : i32
    return %arg0, %arg1, %c0_i32 : i32, i32, i32
  }
}

module attributes {stable_mosaic.version = 11 : i64} {
  func.func @out_proj_ln_kernel(%arg0: i32, %arg1: memref<16x64xbf16, #tpu.memory_space<vmem>>, %arg2: memref<16x32xf32, #tpu.memory_space<vmem>>, %arg3: memref<64x32xbf16, #tpu.memory_space<vmem>>, %arg4: memref<1x32xf32, #tpu.memory_space<vmem>>, %arg5: memref<1x32xf32, #tpu.memory_space<vmem>>, %arg6: memref<1x32xf32, #tpu.memory_space<vmem>>, %arg7: memref<16x32xf32, #tpu.memory_space<vmem>>) attributes {dimension_semantics = [#tpu.dimension_semantics<parallel>], iteration_bounds = array<i64: 1>, scalar_prefetch = 0 : i64, scratch_operands = 0 : i64, tpu.core_type = #tpu.core_type<tc>, window_params = [{transform_indices = @transform_0, window_bounds = array<i64: 16, 64>}, {transform_indices = @transform_1, window_bounds = array<i64: 16, 32>}, {pipeline_mode = #tpu.pipeline_mode<synchronous>, transform_indices = @transform_2, window_bounds = array<i64: 64, 32>}, {pipeline_mode = #tpu.pipeline_mode<synchronous>, transform_indices = @transform_3, window_bounds = array<i64: 1, 32>}, {pipeline_mode = #tpu.pipeline_mode<synchronous>, transform_indices = @transform_4, window_bounds = array<i64: 1, 32>}, {pipeline_mode = #tpu.pipeline_mode<synchronous>, transform_indices = @transform_5, window_bounds = array<i64: 1, 32>}, {transform_indices = @transform_6, window_bounds = array<i64: 16, 32>}]} {
    %c0 = arith.constant 0 : index
    %c0_0 = arith.constant 0 : index
    %0 = vector.load %arg1[%c0, %c0_0] : memref<16x64xbf16, #tpu.memory_space<vmem>>, vector<16x64xbf16>
    %c0_1 = arith.constant 0 : index
    %c0_2 = arith.constant 0 : index
    %1 = vector.load %arg3[%c0_1, %c0_2] : memref<64x32xbf16, #tpu.memory_space<vmem>>, vector<64x32xbf16>
    %cst = arith.constant dense<0.000000e+00> : vector<16x32xf32>
    %2 = tpu.matmul %0, %1, %cst {dimension_numbers = #tpu.dot_dimension_numbers<[1], [0], [0], [1], [0, 0, 1, 1], [], []>} : vector<16x64xbf16>, vector<64x32xbf16>, vector<16x32xf32> -> vector<16x32xf32>
    %c0_3 = arith.constant 0 : index
    %c0_4 = arith.constant 0 : index
    %3 = vector.load %arg4[%c0_3, %c0_4] : memref<1x32xf32, #tpu.memory_space<vmem>>, vector<1x32xf32>
    %4 = vector.broadcast %3 : vector<1x32xf32> to vector<16x32xf32>
    %5 = arith.addf %2, %4 : vector<16x32xf32>
    %c0_5 = arith.constant 0 : index
    %c0_6 = arith.constant 0 : index
    %6 = vector.load %arg2[%c0_5, %c0_6] : memref<16x32xf32, #tpu.memory_space<vmem>>, vector<16x32xf32>
    %7 = arith.addf %6, %5 : vector<16x32xf32>
    %cst_7 = arith.constant dense<0.000000e+00> : vector<16xf32>
    %8 = vector.multi_reduction <add>, %7, %cst_7 [1] : vector<16x32xf32> to vector<16xf32>
    %9 = vector.shape_cast %8 : vector<16xf32> to vector<16x1xf32>
    %cst_8 = arith.constant 3.200000e+01 : f32
    %10 = vector.broadcast %cst_8 : f32 to vector<16x1xf32>
    %11 = arith.divf %9, %10 : vector<16x1xf32>
    %12 = vector.broadcast %11 : vector<16x1xf32> to vector<16x32xf32>
    %13 = arith.subf %7, %12 : vector<16x32xf32>
    %14 = arith.mulf %13, %13 : vector<16x32xf32>
    %cst_9 = arith.constant dense<0.000000e+00> : vector<16xf32>
    %15 = vector.multi_reduction <add>, %14, %cst_9 [1] : vector<16x32xf32> to vector<16xf32>
    %16 = vector.shape_cast %15 : vector<16xf32> to vector<16x1xf32>
    %cst_10 = arith.constant 3.200000e+01 : f32
    %17 = vector.broadcast %cst_10 : f32 to vector<16x1xf32>
    %18 = arith.divf %16, %17 : vector<16x1xf32>
    %cst_11 = arith.constant 9.99999974E-6 : f32
    %19 = vector.broadcast %cst_11 : f32 to vector<16x1xf32>
    %20 = arith.addf %18, %19 : vector<16x1xf32>
    %21 = math.rsqrt %20 : vector<16x1xf32>
    %22 = vector.broadcast %21 : vector<16x1xf32> to vector<16x32xf32>
    %23 = arith.mulf %13, %22 : vector<16x32xf32>
    %c0_12 = arith.constant 0 : index
    %c0_13 = arith.constant 0 : index
    %24 = vector.load %arg5[%c0_12, %c0_13] : memref<1x32xf32, #tpu.memory_space<vmem>>, vector<1x32xf32>
    %25 = vector.broadcast %24 : vector<1x32xf32> to vector<16x32xf32>
    %26 = arith.mulf %23, %25 : vector<16x32xf32>
    %c0_14 = arith.constant 0 : index
    %c0_15 = arith.constant 0 : index
    %27 = vector.load %arg6[%c0_14, %c0_15] : memref<1x32xf32, #tpu.memory_space<vmem>>, vector<1x32xf32>
    %28 = vector.broadcast %27 : vector<1x32xf32> to vector<16x32xf32>
    %29 = arith.addf %26, %28 : vector<16x32xf32>
    %c0_16 = arith.constant 0 : index
    %c0_17 = arith.constant 0 : index
    %30 = vector.load %arg7[%c0_16, %c0_17] : memref<16x32xf32, #tpu.memory_space<vmem>>, vector<16x32xf32>
    tpu.vector_store %arg7[%c0_16, %c0_17], %29 {strides = array<i32>} : memref<16x32xf32, #tpu.memory_space<vmem>>, vector<16x32xf32>,
    return
  }
  func.func @transform_0(%arg0: i32) -> (i32, i32) {
    %c0_i32 = arith.constant 0 : i32
    %c0_i32_0 = arith.constant 0 : i32
    return %arg0, %c0_i32 : i32, i32
  }
  func.func @transform_1(%arg0: i32) -> (i32, i32) {
    %c0_i32 = arith.constant 0 : i32
    %c0_i32_0 = arith.constant 0 : i32
    return %arg0, %c0_i32 : i32, i32
  }
  func.func @transform_2(%arg0: i32) -> (i32, i32) {
    %c0_i32 = arith.constant 0 : i32
    %c0_i32_0 = arith.constant 0 : i32
    %c0_i32_1 = arith.constant 0 : i32
    return %c0_i32, %c0_i32_0 : i32, i32
  }
  func.func @transform_3(%arg0: i32) -> (i32, i32) {
    %c0_i32 = arith.constant 0 : i32
    %c0_i32_0 = arith.constant 0 : i32
    %c0_i32_1 = arith.constant 0 : i32
    return %c0_i32, %c0_i32_0 : i32, i32
  }
  func.func @transform_4(%arg0: i32) -> (i32, i32) {
    %c0_i32 = arith.constant 0 : i32
    %c0_i32_0 = arith.constant 0 : i32
    %c0_i32_1 = arith.constant 0 : i32
    return %c0_i32, %c0_i32_0 : i32, i32
  }
  func.func @transform_5(%arg0: i32) -> (i32, i32) {
    %c0_i32 = arith.constant 0 : i32
    %c0_i32_0 = arith.constant 0 : i32
    %c0_i32_1 = arith.constant 0 : i32
    return %c0_i32, %c0_i32_0 : i32, i32
  }
  func.func @transform_6(%arg0: i32) -> (i32, i32) {
    %c0_i32 = arith.constant 0 : i32
    %c0_i32_0 = arith.constant 0 : i32
    return %arg0, %c0_i32 : i32, i32
  }
}

</mosaic_0001>

<llo_original>
// kernel: multi_head_attention.5
$region0: #{multi_head_attention.5}
  #allocation0 [shape = 'u32[]', space=smem, size = 0x4, offset = 0x4, fixed_abs, tag = 'smem constant byte address 0x4 - core index']
  #allocation1 [shape = 'u32[144,128]{1,0:T(1,128)}', space=vmem, size = 0x12000, scoped, tag = 'internal scratch']
  %s0 = inlined_call_operand.vmem [shape: bf16[16,64], index: 0, kind: input, shape index: {}]
  %s1 = inlined_call_operand.vmem [shape: f32[16,32], index: 1, kind: input, shape index: {}]
  %s2 = inlined_call_operand.vmem [shape: bf16[64,32], index: 2, kind: input, shape index: {}]
  %s3 = inlined_call_operand.vmem [shape: f32[1,32], index: 3, kind: input, shape index: {}]
  %s4 = inlined_call_operand.vmem [shape: f32[1,32], index: 4, kind: input, shape index: {}]
  %s5 = inlined_call_operand.vmem [shape: f32[1,32], index: 5, kind: input, shape index: {}]
  %s6 = inlined_call_operand.hbm [shape: f32[16,32], index: 6, kind: output, shape index: {}]
  %s7 = sld [smem:[#allocation0]]
  $region34: #{multi_head_attention.5} parent=0
    _
  %s9 = ssub.s32 1, %s7
  %s10 = scalar_select 0, %s9, %s7
  $region1: #{multi_head_attention.5} parent=0
    #allocation2 [shape = 'u8[8192]{0}', space=vmem, size = 0x2000, scoped, tag = 'output window, operand 0, single buffered']
    #allocation3 [shape = 's32[1]{0}', space=sflag, size = 0x4, scoped, tag = 'scoped memory for multi_head_attention.5']
    %11 = vsyncpa [#allocation3], 0
    // Predicated region
    $region2: #{multi_head_attention.5} parent=1 // pred_check
      _
    $region3: #{multi_head_attention.5} parent=1 // pred_check_branch
      %13 = sbr.rel (0) target = $region5
    $region4: #{multi_head_attention.5} parent=1 // pred_region
      _
    $region5: #{multi_head_attention.5} parent=1 // pred_fallthru
      _
    // Predicated region
    $region6: #{multi_head_attention.5} parent=1 // pred_check
      _
    $region7: #{multi_head_attention.5} parent=1 // pred_check_branch
      %15 = sbr.rel (0) target = $region9
    $region8: #{multi_head_attention.5} parent=1 // pred_region
      _
    $region9: #{multi_head_attention.5} parent=1 // pred_fallthru
      _
    // Predicated region
    $region10: #{multi_head_attention.5} parent=1 // pred_check
      _
    $region11: #{multi_head_attention.5} parent=1 // pred_check_branch
      %17 = sbr.rel (0) target = $region13
    $region12: #{multi_head_attention.5} parent=1 // pred_region
      _
    $region13: #{multi_head_attention.5} parent=1 // pred_fallthru
      _
    // Predicated region
    $region14: #{multi_head_attention.5} parent=1 // pred_check
      _
    $region15: #{multi_head_attention.5} parent=1 // pred_check_branch
      %19 = sbr.rel (0) target = $region17
    $region16: #{multi_head_attention.5} parent=1 // pred_region
      _
    $region17: #{multi_head_attention.5} parent=1 // pred_fallthru
      _
    // Predicated region
    $region18: #{multi_head_attention.5} parent=1 // pred_check
      _
    $region19: #{multi_head_attention.5} parent=1 // pred_check_branch
      %21 = sbr.rel (0) target = $region21
    $region20: #{multi_head_attention.5} parent=1 // pred_region
      _
    $region21: #{multi_head_attention.5} parent=1 // pred_fallthru
      _
    // Predicated region
    $region22: #{multi_head_attention.5} parent=1 // pred_check
      _
    $region23: #{multi_head_attention.5} parent=1 // pred_check_branch
      %23 = sbr.rel (0) target = $region25
    $region24: #{multi_head_attention.5} parent=1 // pred_region
      _
    $region25: #{multi_head_attention.5} parent=1 // pred_fallthru
      _
    %v25 = vld [vmem:[%s0] sm:$0xf]
    %v26 = vld [vmem:[%s0 + $0x4] sm:$0xf]
    %v27 = vld [vmem:[%s2] sm:$0xf]
    %v28 = vld [vmem:[%s2 + $0x4] sm:$0xf]
    %v29 = vld [vmem:[%s2 + $0x8] sm:$0xf]
    %v30 = vld [vmem:[%s2 + $0xc] sm:$0xf]
    %v31 = vld [vmem:[%s2 + $0x10] sm:$0xf]
    %v32 = vld [vmem:[%s2 + $0x14] sm:$0xf]
    %v33 = vld [vmem:[%s2 + $0x18] sm:$0xf]
    %v34 = vld [vmem:[%s2 + $0x1c] sm:$0xf]
    %v35 = vld [vmem:[%s3] sm:$0x1]
    %v37 = vlaneseq
    %v38 = vshrl.u32 %v37, 7
    %v39 = vsub.s32 0, %v38
    %v40 = vrot.slane %v35, %v39
    %v44 = vunpack.c.l.b16 %v25
    %v45 = vunpack.c.l.b16 %v26
    %v46 = vpack.c.b16 %v45, %v44
    %v55 = vunpack.c.l.b16 %v27
    %v56 = vunpack.c.l.b16 %v28
    %v57 = vunpack.c.l.b16 %v29
    %v58 = vunpack.c.l.b16 %v30
    %v59 = vunpack.c.l.b16 %v31
    %v60 = vunpack.c.l.b16 %v32
    %v61 = vunpack.c.l.b16 %v33
    %v62 = vunpack.c.l.b16 %v34
    %v63 = vpack.c.b16 %v56, %v55
    %v64 = vpack.c.b16 %v58, %v57
    %v65 = vpack.c.b16 %v60, %v59
    %v66 = vpack.c.b16 %v62, %v61
    %vm71 = vcmask 523264
    %v73 = vsel %vm71, %v46, 0
    %75 = vmatprep.subr.bf16.mxu0 0
    %76 = vmatpush1.bf16.msra.mxu0 %v63
    %77 = vmatprep.subr.bf16.mxu0 0
    %78 = vmatpush1.bf16.msra.mxu0 %v64
    %79 = vmatprep.subr.bf16.mxu0 0
    %80 = vmatpush1.bf16.msra.mxu0 %v65
    %81 = vmatprep.subr.bf16.mxu0 0
    %82 = vmatpush1.bf16.msra.mxu0 %v66
    %83 = vmatprep.subr.bf16.mxu0 0
    %84 = vmatpush1.bf16.msra.mxu0 0
    %85 = vmatprep.subr.bf16.mxu0 0
    %86 = vmatpush1.bf16.msra.mxu0 0
    %87 = vmatprep.subr.bf16.mxu0 0
    %88 = vmatpush1.bf16.msra.mxu0 0
    %89 = vmatprep.subr.bf16.mxu0 0
    %90 = vmatpush1.bf16.msra.mxu0 0
    %91 = vmatprep.subr.bf16.mxu0 0
    %92 = vmatpush1.bf16.msra.mxu0 0
    %93 = vmatprep.subr.bf16.mxu0 0
    %94 = vmatpush1.bf16.msra.mxu0 0
    %95 = vmatprep.subr.bf16.mxu0 0
    %96 = vmatpush1.bf16.msra.mxu0 0
    %97 = vmatprep.subr.bf16.mxu0 0
    %98 = vmatpush1.bf16.msra.mxu0 0
    %99 = vmatprep.subr.bf16.mxu0 0
    %100 = vmatpush1.bf16.msra.mxu0 0
    %101 = vmatprep.subr.bf16.mxu0 0
    %102 = vmatpush1.bf16.msra.mxu0 0
    %103 = vmatprep.subr.bf16.mxu0 0
    %104 = vmatpush1.bf16.msra.mxu0 0
    %105 = vmatprep.subr.bf16.mxu0 0
    %106 = vmatpush1.bf16.msra.mxu0 0
    %107 = vmatprep.mubr.bf16.mxu0 0
    %108 = vmatmul.mubr.bf16.gmra.mrb[0].mxu0 %v73
    %v109 = vpop.f32.mrb[0].mxu0
    %v110 = vadd.f32 %v40, %v109
    %v111 = vpop.f32.mrb[0].mxu0
    %v112 = vpop.f32.mrb[0].mxu0
    %v113 = vadd.f32 %v40, %v112
    %v114 = vpop.f32.mrb[0].mxu0
    %115 = vdwg.mxu0
    %v116 = vld [vmem:[%s1] sm:$0xff]
    %v117 = vld [vmem:[%s1 + $0x8] sm:$0xff]
    %v118 = vadd.f32 %v116, %v110
    %v119 = vadd.f32 %v117, %v113
    %vm120 = vcmask 261120
    %v121 = vsel %vm120, %v118, 0.0
    %122 = vadd.xlane.f32.xlu0 %v121
    %v123 = vpop.xlane.xlu0 %122
    %v124 = vsel %vm120, %v119, 0.0
    %125 = vadd.xlane.f32.xlu0 %v124
    %v126 = vpop.xlane.xlu0 %125
    %v127 = vrcp.pop 32.0
    %v128 = vmul.f32 %v123, %v127
    %v129 = vmul.f32 %v126, %v127
    %v130 = vsub.f32 %v118, %v128
    %v131 = vsub.f32 %v119, %v129
    %v132 = vmul.f32 %v130, %v130
    %v133 = vmul.f32 %v131, %v131
    %v134 = vsel %vm120, %v132, 0.0
    %135 = vadd.xlane.f32.xlu0 %v134
    %v136 = vpop.xlane.xlu0 %135
    %v137 = vsel %vm120, %v133, 0.0
    %138 = vadd.xlane.f32.xlu0 %v137
    %v139 = vpop.xlane.xlu0 %138
    %v140 = vmul.f32 %v136, %v127
    %v141 = vmul.f32 %v139, %v127
    %v142 = vadd.f32 %v140, 1e-05
    %v143 = vadd.f32 %v141, 1e-05
    %v144 = vrsqrt.pop %v142
    %v145 = vrsqrt.pop %v143
    %v146 = vmul.f32 %v130, %v144
    %v147 = vmul.f32 %v131, %v145
    %v148 = vld [vmem:[%s4] sm:$0x1]
    %v150 = vlaneseq
    %v151 = vshrl.u32 %v150, 7
    %v152 = vsub.s32 0, %v151
    %v153 = vrot.slane %v148, %v152
    %v155 = vmul.f32 %v146, %v153
    %v156 = vmul.f32 %v147, %v153
    %v157 = vld [vmem:[%s5] sm:$0x1]
    %v159 = vlaneseq
    %v160 = vshrl.u32 %v159, 7
    %v161 = vsub.s32 0, %v160
    %v162 = vrot.slane %v157, %v161
    %v164 = vadd.f32 %v155, %v162
    %v165 = vadd.f32 %v156, %v162
    %166 = vst.msk [vmem:[#allocation2] sm:$0xff] %vm120, %v164
    %167 = vst.msk [vmem:[#allocation2 + $0x8] sm:$0xff] %vm120, %v165
    // Predicated region
    $region26: #{multi_head_attention.5} parent=1 // pred_check
      _
    $region27: #{multi_head_attention.5} parent=1 // pred_check_branch
      %169 = sbr.rel (0) target = $region29
    $region28: #{multi_head_attention.5} parent=1 // pred_region
      %s171 = ssub.s32 256, 256
      %172 = vsyncadd [#allocation3], %s171
      %s173 = sshll.u32 [#allocation2], 4
      %s174 = int_to_ptr.vmem [resolvable:$true] %s173
      %179 = dma.vmem_to_hbm [thread:$0]  %s174, 256, %s6, [#allocation3], 128, 128, 8
    $region29: #{multi_head_attention.5} parent=1 // pred_fallthru
      _
    // Predicated region
    $region30: #{multi_head_attention.5} parent=1 // pred_check
      _
    $region31: #{multi_head_attention.5} parent=1 // pred_check_branch
      %181 = sbr.rel (0) target = $region33
    $region32: #{multi_head_attention.5} parent=1 // pred_region
      %182 = dma.done [#allocation3], 256
    $region33: #{multi_head_attention.5} parent=1 // pred_fallthru
      _
    %183 = vsyncpa [#allocation3], 1

// kernel: multi_head_attention.3
$region0: #{multi_head_attention.3}
  #allocation0 [shape = 'u32[]', space=smem, size = 0x4, offset = 0x4, fixed_abs, tag = 'smem constant byte address 0x4 - core index']
  #allocation1 [shape = 'u32[144,128]{1,0:T(1,128)}', space=vmem, size = 0x12000, scoped, tag = 'internal scratch']
  %s0 = inlined_call_operand.vmem [shape: f32[16,32], index: 0, kind: input, shape index: {}]
  %s1 = inlined_call_operand.vmem [shape: f32[16,32], index: 1, kind: input, shape index: {}]
  %s2 = inlined_call_operand.vmem [shape: f32[16,32], index: 2, kind: input, shape index: {}]
  %s3 = inlined_call_operand.vmem [shape: bf16[32,64], index: 3, kind: input, shape index: {}]
  %s4 = inlined_call_operand.vmem [shape: f32[1,64], index: 4, kind: input, shape index: {}]
  %s5 = inlined_call_operand.vmem [shape: bf16[32,64], index: 5, kind: input, shape index: {}]
  %s6 = inlined_call_operand.vmem [shape: f32[1,64], index: 6, kind: input, shape index: {}]
  %s7 = inlined_call_operand.vmem [shape: bf16[32,64], index: 7, kind: input, shape index: {}]
  %s8 = inlined_call_operand.vmem [shape: f32[1,64], index: 8, kind: input, shape index: {}]
  %s9 = inlined_call_operand.vmem [shape: bf16[16,64], index: 9, kind: output, shape index: {0}]
  %s10 = inlined_call_operand.vmem [shape: bf16[16,64], index: 10, kind: output, shape index: {1}]
  %s11 = inlined_call_operand.vmem [shape: bf16[16,64], index: 11, kind: output, shape index: {2}]
  %12 = xla_tuple %s9, %s10, %s11
  %s13 = sld [smem:[#allocation0]]
  $region62: #{multi_head_attention.3} parent=0
    _
  %s15 = ssub.s32 1, %s13
  %s16 = scalar_select 0, %s15, %s13
  // Predicated region
  $region2: #{multi_head_attention.3} parent=0 // pred_check
    _
  $region3: #{multi_head_attention.3} parent=0 // pred_check_branch
    %18 = sbr.rel (0) target = $region5
  $region4: #{multi_head_attention.3} parent=0 // pred_region
    _
  $region5: #{multi_head_attention.3} parent=0 // pred_fallthru
    _
  // Predicated region
  $region6: #{multi_head_attention.3} parent=0 // pred_check
    _
  $region7: #{multi_head_attention.3} parent=0 // pred_check_branch
    %20 = sbr.rel (0) target = $region9
  $region8: #{multi_head_attention.3} parent=0 // pred_region
    _
  $region9: #{multi_head_attention.3} parent=0 // pred_fallthru
    _
  // Predicated region
  $region10: #{multi_head_attention.3} parent=0 // pred_check
    _
  $region11: #{multi_head_attention.3} parent=0 // pred_check_branch
    %22 = sbr.rel (0) target = $region13
  $region12: #{multi_head_attention.3} parent=0 // pred_region
    _
  $region13: #{multi_head_attention.3} parent=0 // pred_fallthru
    _
  // Predicated region
  $region14: #{multi_head_attention.3} parent=0 // pred_check
    _
  $region15: #{multi_head_attention.3} parent=0 // pred_check_branch
    %24 = sbr.rel (0) target = $region17
  $region16: #{multi_head_attention.3} parent=0 // pred_region
    _
  $region17: #{multi_head_attention.3} parent=0 // pred_fallthru
    _
  // Predicated region
  $region18: #{multi_head_attention.3} parent=0 // pred_check
    _
  $region19: #{multi_head_attention.3} parent=0 // pred_check_branch
    %26 = sbr.rel (0) target = $region21
  $region20: #{multi_head_attention.3} parent=0 // pred_region
    _
  $region21: #{multi_head_attention.3} parent=0 // pred_fallthru
    _
  // Predicated region
  $region22: #{multi_head_attention.3} parent=0 // pred_check
    _
  $region23: #{multi_head_attention.3} parent=0 // pred_check_branch
    %28 = sbr.rel (0) target = $region25
  $region24: #{multi_head_attention.3} parent=0 // pred_region
    _
  $region25: #{multi_head_attention.3} parent=0 // pred_fallthru
    _
  // Predicated region
  $region26: #{multi_head_attention.3} parent=0 // pred_check
    _
  $region27: #{multi_head_attention.3} parent=0 // pred_check_branch
    %30 = sbr.rel (0) target = $region29
  $region28: #{multi_head_attention.3} parent=0 // pred_region
    _
  $region29: #{multi_head_attention.3} parent=0 // pred_fallthru
    _
  // Predicated region
  $region30: #{multi_head_attention.3} parent=0 // pred_check
    _
  $region31: #{multi_head_attention.3} parent=0 // pred_check_branch
    %32 = sbr.rel (0) target = $region33
  $region32: #{multi_head_attention.3} parent=0 // pred_region
    _
  $region33: #{multi_head_attention.3} parent=0 // pred_fallthru
    _
  // Predicated region
  $region34: #{multi_head_attention.3} parent=0 // pred_check
    _
  $region35: #{multi_head_attention.3} parent=0 // pred_check_branch
    %34 = sbr.rel (0) target = $region37
  $region36: #{multi_head_attention.3} parent=0 // pred_region
    _
  $region37: #{multi_head_attention.3} parent=0 // pred_fallthru
    _
  %v36 = vld [vmem:[%s0] sm:$0xff]
  %v37 = vld [vmem:[%s0 + $0x8] sm:$0xff]
  %v38 = vpack.c.bf16 %v37, %v36
  %v39 = vld [vmem:[%s3] sm:$0xf]
  %v40 = vld [vmem:[%s3 + $0x4] sm:$0xf]
  %v41 = vld [vmem:[%s3 + $0x8] sm:$0xf]
  %v42 = vld [vmem:[%s3 + $0xc] sm:$0xf]
  %v43 = vld [vmem:[%s4] sm:$0x1]
  %v45 = vlaneseq
  %v46 = vshrl.u32 %v45, 7
  %v47 = vsub.s32 0, %v46
  %v48 = vrot.slane %v43, %v47
  %v54 = vunpack.c.l.b16 %v39
  %v55 = vunpack.c.l.b16 %v40
  %v56 = vunpack.c.l.b16 %v41
  %v57 = vunpack.c.l.b16 %v42
  %v58 = vpack.c.b16 %v55, %v54
  %v59 = vpack.c.b16 %v57, %v56
  %vm62 = vcmask 261120
  %v64 = vsel %vm62, %v38, 0
  %66 = vmatprep.subr.bf16.mxu0 0
  %67 = vmatpush1.bf16.msra.mxu0 %v58
  %68 = vmatprep.subr.bf16.mxu0 0
  %69 = vmatpush1.bf16.msra.mxu0 %v59
  %70 = vmatprep.subr.bf16.mxu0 0
  %71 = vmatpush1.bf16.msra.mxu0 0
  %72 = vmatprep.subr.bf16.mxu0 0
  %73 = vmatpush1.bf16.msra.mxu0 0
  %74 = vmatprep.subr.bf16.mxu0 0
  %75 = vmatpush1.bf16.msra.mxu0 0
  %76 = vmatprep.subr.bf16.mxu0 0
  %77 = vmatpush1.bf16.msra.mxu0 0
  %78 = vmatprep.subr.bf16.mxu0 0
  %79 = vmatpush1.bf16.msra.mxu0 0
  %80 = vmatprep.subr.bf16.mxu0 0
  %81 = vmatpush1.bf16.msra.mxu0 0
  %82 = vmatprep.subr.bf16.mxu0 0
  %83 = vmatpush1.bf16.msra.mxu0 0
  %84 = vmatprep.subr.bf16.mxu0 0
  %85 = vmatpush1.bf16.msra.mxu0 0
  %86 = vmatprep.subr.bf16.mxu0 0
  %87 = vmatpush1.bf16.msra.mxu0 0
  %88 = vmatprep.subr.bf16.mxu0 0
  %89 = vmatpush1.bf16.msra.mxu0 0
  %90 = vmatprep.subr.bf16.mxu0 0
  %91 = vmatpush1.bf16.msra.mxu0 0
  %92 = vmatprep.subr.bf16.mxu0 0
  %93 = vmatpush1.bf16.msra.mxu0 0
  %94 = vmatprep.subr.bf16.mxu0 0
  %95 = vmatpush1.bf16.msra.mxu0 0
  %96 = vmatprep.subr.bf16.mxu0 0
  %97 = vmatpush1.bf16.msra.mxu0 0
  %98 = vmatprep.mubr.bf16.mxu0 0
  %99 = vmatmul.mubr.bf16.gmra.mrb[0].mxu0 %v64
  %v100 = vpop.f32.mrb[0].mxu0
  %v101 = vadd.f32 %v48, %v100
  %v102 = vpop.f32.mrb[0].mxu0
  %v103 = vpop.f32.mrb[0].mxu0
  %v104 = vadd.f32 %v48, %v103
  %v105 = vpop.f32.mrb[0].mxu0
  %106 = vdwg.mxu0
  %v107 = vpack.c.bf16 %v104, %v101
  %v109 = vunpack.c.l.b16 %v107
  %v110 = vunpack.c.h.b16 %v107
  %v111 = vpack.c.b16 %v109, %v109
  %v112 = vpack.c.b16 %v110, %v110
  %vm115 = vcmask 519168
  %116 = vst.msk [vmem:[%s9] sm:$0xf] %vm115, %v111
  %117 = vst.msk [vmem:[%s9 + $0x4] sm:$0xf] %vm115, %v112
  %v118 = vld [vmem:[%s1] sm:$0xff]
  %v119 = vld [vmem:[%s1 + $0x8] sm:$0xff]
  %v120 = vpack.c.bf16 %v119, %v118
  %v121 = vld [vmem:[%s5] sm:$0xf]
  %v122 = vld [vmem:[%s5 + $0x4] sm:$0xf]
  %v123 = vld [vmem:[%s5 + $0x8] sm:$0xf]
  %v124 = vld [vmem:[%s5 + $0xc] sm:$0xf]
  %v125 = vld [vmem:[%s6] sm:$0x1]
  %v127 = vlaneseq
  %v128 = vshrl.u32 %v127, 7
  %v129 = vsub.s32 0, %v128
  %v130 = vrot.slane %v125, %v129
  %v136 = vunpack.c.l.b16 %v121
  %v137 = vunpack.c.l.b16 %v122
  %v138 = vunpack.c.l.b16 %v123
  %v139 = vunpack.c.l.b16 %v124
  %v140 = vpack.c.b16 %v137, %v136
  %v141 = vpack.c.b16 %v139, %v138
  %v145 = vsel %vm62, %v120, 0
  %147 = vmatprep.subr.bf16.mxu0 0
  %148 = vmatpush1.bf16.msra.mxu0 %v140
  %149 = vmatprep.subr.bf16.mxu0 0
  %150 = vmatpush1.bf16.msra.mxu0 %v141
  %151 = vmatprep.subr.bf16.mxu0 0
  %152 = vmatpush1.bf16.msra.mxu0 0
  %153 = vmatprep.subr.bf16.mxu0 0
  %154 = vmatpush1.bf16.msra.mxu0 0
  %155 = vmatprep.subr.bf16.mxu0 0
  %156 = vmatpush1.bf16.msra.mxu0 0
  %157 = vmatprep.subr.bf16.mxu0 0
  %158 = vmatpush1.bf16.msra.mxu0 0
  %159 = vmatprep.subr.bf16.mxu0 0
  %160 = vmatpush1.bf16.msra.mxu0 0
  %161 = vmatprep.subr.bf16.mxu0 0
  %162 = vmatpush1.bf16.msra.mxu0 0
  %163 = vmatprep.subr.bf16.mxu0 0
  %164 = vmatpush1.bf16.msra.mxu0 0
  %165 = vmatprep.subr.bf16.mxu0 0
  %166 = vmatpush1.bf16.msra.mxu0 0
  %167 = vmatprep.subr.bf16.mxu0 0
  %168 = vmatpush1.bf16.msra.mxu0 0
  %169 = vmatprep.subr.bf16.mxu0 0
  %170 = vmatpush1.bf16.msra.mxu0 0
  %171 = vmatprep.subr.bf16.mxu0 0
  %172 = vmatpush1.bf16.msra.mxu0 0
  %173 = vmatprep.subr.bf16.mxu0 0
  %174 = vmatpush1.bf16.msra.mxu0 0
  %175 = vmatprep.subr.bf16.mxu0 0
  %176 = vmatpush1.bf16.msra.mxu0 0
  %177 = vmatprep.subr.bf16.mxu0 0
  %178 = vmatpush1.bf16.msra.mxu0 0
  %179 = vmatprep.mubr.bf16.mxu0 0
  %180 = vmatmul.mubr.bf16.gmra.mrb[0].mxu0 %v145
  %v181 = vpop.f32.mrb[0].mxu0
  %v182 = vadd.f32 %v130, %v181
  %v183 = vpop.f32.mrb[0].mxu0
  %v184 = vpop.f32.mrb[0].mxu0
  %v185 = vadd.f32 %v130, %v184
  %v186 = vpop.f32.mrb[0].mxu0
  %187 = vdwg.mxu0
  %v188 = vpack.c.bf16 %v185, %v182
  %v190 = vunpack.c.l.b16 %v188
  %v191 = vunpack.c.h.b16 %v188
  %v192 = vpack.c.b16 %v190, %v190
  %v193 = vpack.c.b16 %v191, %v191
  %196 = vst.msk [vmem:[%s10] sm:$0xf] %vm115, %v192
  %197 = vst.msk [vmem:[%s10 + $0x4] sm:$0xf] %vm115, %v193
  %v198 = vld [vmem:[%s2] sm:$0xff]
  %v199 = vld [vmem:[%s2 + $0x8] sm:$0xff]
  %v200 = vpack.c.bf16 %v199, %v198
  %v201 = vld [vmem:[%s7] sm:$0xf]
  %v202 = vld [vmem:[%s7 + $0x4] sm:$0xf]
  %v203 = vld [vmem:[%s7 + $0x8] sm:$0xf]
  %v204 = vld [vmem:[%s7 + $0xc] sm:$0xf]
  %v205 = vld [vmem:[%s8] sm:$0x1]
  %v207 = vlaneseq
  %v208 = vshrl.u32 %v207, 7
  %v209 = vsub.s32 0, %v208
  %v210 = vrot.slane %v205, %v209
  %v216 = vunpack.c.l.b16 %v201
  %v217 = vunpack.c.l.b16 %v202
  %v218 = vunpack.c.l.b16 %v203
  %v219 = vunpack.c.l.b16 %v204
  %v220 = vpack.c.b16 %v217, %v216
  %v221 = vpack.c.b16 %v219, %v218
  %v225 = vsel %vm62, %v200, 0
  %227 = vmatprep.subr.bf16.mxu0 0
  %228 = vmatpush1.bf16.msra.mxu0 %v220
  %229 = vmatprep.subr.bf16.mxu0 0
  %230 = vmatpush1.bf16.msra.mxu0 %v221
  %231 = vmatprep.subr.bf16.mxu0 0
  %232 = vmatpush1.bf16.msra.mxu0 0
  %233 = vmatprep.subr.bf16.mxu0 0
  %234 = vmatpush1.bf16.msra.mxu0 0
  %235 = vmatprep.subr.bf16.mxu0 0
  %236 = vmatpush1.bf16.msra.mxu0 0
  %237 = vmatprep.subr.bf16.mxu0 0
  %238 = vmatpush1.bf16.msra.mxu0 0
  %239 = vmatprep.subr.bf16.mxu0 0
  %240 = vmatpush1.bf16.msra.mxu0 0
  %241 = vmatprep.subr.bf16.mxu0 0
  %242 = vmatpush1.bf16.msra.mxu0 0
  %243 = vmatprep.subr.bf16.mxu0 0
  %244 = vmatpush1.bf16.msra.mxu0 0
  %245 = vmatprep.subr.bf16.mxu0 0
  %246 = vmatpush1.bf16.msra.mxu0 0
  %247 = vmatprep.subr.bf16.mxu0 0
  %248 = vmatpush1.bf16.msra.mxu0 0
  %249 = vmatprep.subr.bf16.mxu0 0
  %250 = vmatpush1.bf16.msra.mxu0 0
  %251 = vmatprep.subr.bf16.mxu0 0
  %252 = vmatpush1.bf16.msra.mxu0 0
  %253 = vmatprep.subr.bf16.mxu0 0
  %254 = vmatpush1.bf16.msra.mxu0 0
  %255 = vmatprep.subr.bf16.mxu0 0
  %256 = vmatpush1.bf16.msra.mxu0 0
  %257 = vmatprep.subr.bf16.mxu0 0
  %258 = vmatpush1.bf16.msra.mxu0 0
  %259 = vmatprep.mubr.bf16.mxu0 0
  %260 = vmatmul.mubr.bf16.gmra.mrb[0].mxu0 %v225
  %v261 = vpop.f32.mrb[0].mxu0
  %v262 = vadd.f32 %v210, %v261
  %v263 = vpop.f32.mrb[0].mxu0
  %v264 = vpop.f32.mrb[0].mxu0
  %v265 = vadd.f32 %v210, %v264
  %v266 = vpop.f32.mrb[0].mxu0
  %267 = vdwg.mxu0
  %v268 = vpack.c.bf16 %v265, %v262
  %v270 = vunpack.c.l.b16 %v268
  %v271 = vunpack.c.h.b16 %v268
  %v272 = vpack.c.b16 %v270, %v270
  %v273 = vpack.c.b16 %v271, %v271
  %276 = vst.msk [vmem:[%s11] sm:$0xf] %vm115, %v272
  %277 = vst.msk [vmem:[%s11 + $0x4] sm:$0xf] %vm115, %v273
  // Predicated region
  $region38: #{multi_head_attention.3} parent=0 // pred_check
    _
  $region39: #{multi_head_attention.3} parent=0 // pred_check_branch
    %279 = sbr.rel (0) target = $region41
  $region40: #{multi_head_attention.3} parent=0 // pred_region
    _
  $region41: #{multi_head_attention.3} parent=0 // pred_fallthru
    _
  // Predicated region
  $region42: #{multi_head_attention.3} parent=0 // pred_check
    _
  $region43: #{multi_head_attention.3} parent=0 // pred_check_branch
    %281 = sbr.rel (0) target = $region45
  $region44: #{multi_head_attention.3} parent=0 // pred_region
    _
  $region45: #{multi_head_attention.3} parent=0 // pred_fallthru
    _
  // Predicated region
  $region46: #{multi_head_attention.3} parent=0 // pred_check
    _
  $region47: #{multi_head_attention.3} parent=0 // pred_check_branch
    %283 = sbr.rel (0) target = $region49
  $region48: #{multi_head_attention.3} parent=0 // pred_region
    _
  $region49: #{multi_head_attention.3} parent=0 // pred_fallthru
    _
  // Predicated region
  $region50: #{multi_head_attention.3} parent=0 // pred_check
    _
  $region51: #{multi_head_attention.3} parent=0 // pred_check_branch
    %285 = sbr.rel (0) target = $region53
  $region52: #{multi_head_attention.3} parent=0 // pred_region
    _
  $region53: #{multi_head_attention.3} parent=0 // pred_fallthru
    _
  // Predicated region
  $region54: #{multi_head_attention.3} parent=0 // pred_check
    _
  $region55: #{multi_head_attention.3} parent=0 // pred_check_branch
    %287 = sbr.rel (0) target = $region57
  $region56: #{multi_head_attention.3} parent=0 // pred_region
    _
  $region57: #{multi_head_attention.3} parent=0 // pred_fallthru
    _
  // Predicated region
  $region58: #{multi_head_attention.3} parent=0 // pred_check
    _
  $region59: #{multi_head_attention.3} parent=0 // pred_check_branch
    %289 = sbr.rel (0) target = $region61
  $region60: #{multi_head_attention.3} parent=0 // pred_region
    _
  $region61: #{multi_head_attention.3} parent=0 // pred_fallthru
    _

// kernel: multi_head_attention.4
$region0: #{multi_head_attention.4}
  #allocation0 [shape = 'u32[]', space=smem, size = 0x4, offset = 0x4, fixed_abs, tag = 'smem constant byte address 0x4 - core index']
  #allocation1 [shape = 'u32[144,128]{1,0:T(1,128)}', space=vmem, size = 0x12000, scoped, tag = 'internal scratch']
  #allocation2 [shape = 'f32[8,4]{1,0:T(8,128)}', space=vmem, size = 0x1000, scoped, tag = 'scratch operand']
  #allocation3 [shape = 'f32[8,4]{1,0:T(8,128)}', space=vmem, size = 0x1000, scoped, tag = 'scratch operand']
  #allocation4 [shape = 'f32[8,64]{1,0:T(8,128)}', space=vmem, size = 0x1000, scoped, tag = 'scratch operand']
  %s0 = inlined_call_operand.vmem [shape: bf16[2,8,64], index: 0, kind: input, shape index: {}]
  %s1 = inlined_call_operand.vmem [shape: bf16[2,8,64], index: 1, kind: input, shape index: {}]
  %s2 = inlined_call_operand.vmem [shape: bf16[2,8,64], index: 2, kind: input, shape index: {}]
  %s3 = inlined_call_operand.vmem [shape: bf16[2,8,8], index: 3, kind: input, shape index: {}]
  %s4 = inlined_call_operand.vmem [shape: bf16[2,8,64], index: 4, kind: output, shape index: {}]
  %s5 = sld [smem:[#allocation0]]
  $region57: #{multi_head_attention.4} parent=0
    _
  %s7 = ssub.s32 1, %s5
  %s8 = scalar_select 0, %s7, %s5
  loop: start=0, step=1, limit=4
  $region2: #{multi_head_attention.4} parent=0 // loop_pre_header
    _
  $region3: #{multi_head_attention.4} parent=0 // loop_header
    %s10 = sphi 0, %s14
    %p11 = scmp.ge.s32.totalorder %s10, 4
    %s17 = sphi 0, %s36
    %s18 = sphi 0, %s32
    %s19 = sphi 0, %s28
    %s20 = sphi 0, %s17
    %s21 = sphi 0, %s18
    %s22 = sphi 0, %s19
    %s23 = sphi 0, %s20
    %s24 = sphi 0, %s21
    %s25 = sphi 0, %s22
    %s41 = sphi 0, %s43
    %s44 = sphi 0, %s41
    %s45 = sphi 0, %s44
    %s61 = sphi 0, %s45
    %s69 = sphi 0, %s71
    %s72 = sphi 0, %s69
    %s73 = sphi 0, %s72
    %s89 = sphi 0, %s73
    %s97 = sphi 0, %s99
    %s100 = sphi 0, %s97
    %s101 = sphi 0, %s100
    %s117 = sphi 0, %s101
    %s127 = sphi 0, %s129
    %s130 = sphi 0, %s127
    %s131 = sphi 0, %s130
    %s147 = sphi 0, %s131
    %s155 = sphi 0, %s157
    %s158 = sphi 0, %s155
    %s159 = sphi 0, %s158
    %s175 = sphi 0, %s159
  $region4: #{multi_head_attention.4} parent=0 // loop_header_branch
    %13 = sbr.rel (%p11) target = $region8
  $region5: #{multi_head_attention.4} parent=0 // loop_body
    %s15 = ssub.s32 %s10, 1
    %s16 = ssub.s32 %s10, 2
    %s26 = sadd.s32 1, %s19
    %p27 = scmp.ge.s32.totalorder %s26, 1
    %s28 = scalar_select %p27, 0, %s26
    %s29 = sadd.s32 1, %s18
    %s30 = scalar_select %p27, %s29, %s18
    %p31 = scmp.ge.s32.totalorder %s30, 1
    %s32 = scalar_select %p31, 0, %s30
    %s33 = sadd.s32 1, %s17
    %s34 = scalar_select %p31, %s33, %s17
    %p35 = scmp.ge.s32.totalorder %s34, 2
    %s36 = scalar_select %p35, 0, %s34
    %s37 = ssub.s32 %s17, %s36
    %s38 = ssub.s32 %s18, %s32
    %s39 = sor.u32 %s37, %s38
    %p40 = scmp.eq.s32.totalorder %s39, 0
    %s42 = sadd.s32 %s41, 1
    %s43 = scalar_select %p40, %s41, %s42
    %p46 = pneg %p40
    %p47 = scmp.eq.s32.totalorder %s10, 1
    %p48 = por %p46, %p47
    %p49 = scmp.ne.s32.totalorder %s41, %s44
    %p50 = scmp.eq.s32.totalorder %s10, 0
    %p51 = por %p49, %p50
    %p52 = scmp.ne.s32.totalorder %s41, %s44
    %p53 = scmp.eq.s32.totalorder %s15, 1
    %p54 = por %p52, %p53
    %p55 = scmp.ne.s32.totalorder %s44, %s45
    %p56 = scmp.eq.s32.totalorder %s15, 0
    %p57 = por %p55, %p56
    %p58 = scmp.ne.s32.totalorder %s44, %s45
    %p59 = scmp.eq.s32.totalorder %s16, 1
    %p60 = por %p58, %p59
    %p62 = scmp.ne.s32.totalorder %s45, %s61
    %p63 = scmp.eq.s32.totalorder %s16, 0
    %p64 = por %p62, %p63
    %s65 = ssub.s32 %s17, %s36
    %s66 = ssub.s32 %s19, %s28
    %s67 = sor.u32 %s65, %s66
    %p68 = scmp.eq.s32.totalorder %s67, 0
    %s70 = sadd.s32 %s69, 1
    %s71 = scalar_select %p68, %s69, %s70
    %p74 = pneg %p68
    %p75 = scmp.eq.s32.totalorder %s10, 1
    %p76 = por %p74, %p75
    %p77 = scmp.ne.s32.totalorder %s69, %s72
    %p78 = scmp.eq.s32.totalorder %s10, 0
    %p79 = por %p77, %p78
    %p80 = scmp.ne.s32.totalorder %s69, %s72
    %p81 = scmp.eq.s32.totalorder %s15, 1
    %p82 = por %p80, %p81
    %p83 = scmp.ne.s32.totalorder %s72, %s73
    %p84 = scmp.eq.s32.totalorder %s15, 0
    %p85 = por %p83, %p84
    %p86 = scmp.ne.s32.totalorder %s72, %s73
    %p87 = scmp.eq.s32.totalorder %s16, 1
    %p88 = por %p86, %p87
    %p90 = scmp.ne.s32.totalorder %s73, %s89
    %p91 = scmp.eq.s32.totalorder %s16, 0
    %p92 = por %p90, %p91
    %s93 = ssub.s32 %s17, %s36
    %s94 = ssub.s32 %s19, %s28
    %s95 = sor.u32 %s93, %s94
    %p96 = scmp.eq.s32.totalorder %s95, 0
    %s98 = sadd.s32 %s97, 1
    %s99 = scalar_select %p96, %s97, %s98
    %p102 = pneg %p96
    %p103 = scmp.eq.s32.totalorder %s10, 1
    %p104 = por %p102, %p103
    %p105 = scmp.ne.s32.totalorder %s97, %s100
    %p106 = scmp.eq.s32.totalorder %s10, 0
    %p107 = por %p105, %p106
    %p108 = scmp.ne.s32.totalorder %s97, %s100
    %p109 = scmp.eq.s32.totalorder %s15, 1
    %p110 = por %p108, %p109
    %p111 = scmp.ne.s32.totalorder %s100, %s101
    %p112 = scmp.eq.s32.totalorder %s15, 0
    %p113 = por %p111, %p112
    %p114 = scmp.ne.s32.totalorder %s100, %s101
    %p115 = scmp.eq.s32.totalorder %s16, 1
    %p116 = por %p114, %p115
    %p118 = scmp.ne.s32.totalorder %s101, %s117
    %p119 = scmp.eq.s32.totalorder %s16, 0
    %p120 = por %p118, %p119
    %s121 = ssub.s32 %s17, %s36
    %s122 = ssub.s32 %s18, %s32
    %s123 = sor.u32 %s121, %s122
    %s124 = ssub.s32 %s19, %s28
    %s125 = sor.u32 %s123, %s124
    %p126 = scmp.eq.s32.totalorder %s125, 0
    %s128 = sadd.s32 %s127, 1
    %s129 = scalar_select %p126, %s127, %s128
    %p132 = pneg %p126
    %p133 = scmp.eq.s32.totalorder %s10, 1
    %p134 = por %p132, %p133
    %p135 = scmp.ne.s32.totalorder %s127, %s130
    %p136 = scmp.eq.s32.totalorder %s10, 0
    %p137 = por %p135, %p136
    %p138 = scmp.ne.s32.totalorder %s127, %s130
    %p139 = scmp.eq.s32.totalorder %s15, 1
    %p140 = por %p138, %p139
    %p141 = scmp.ne.s32.totalorder %s130, %s131
    %p142 = scmp.eq.s32.totalorder %s15, 0
    %p143 = por %p141, %p142
    %p144 = scmp.ne.s32.totalorder %s130, %s131
    %p145 = scmp.eq.s32.totalorder %s16, 1
    %p146 = por %p144, %p145
    %p148 = scmp.ne.s32.totalorder %s131, %s147
    %p149 = scmp.eq.s32.totalorder %s16, 0
    %p150 = por %p148, %p149
    %s151 = ssub.s32 %s17, %s36
    %s152 = ssub.s32 %s18, %s32
    %s153 = sor.u32 %s151, %s152
    %p154 = scmp.eq.s32.totalorder %s153, 0
    %s156 = sadd.s32 %s155, 1
    %s157 = scalar_select %p154, %s155, %s156
    %p160 = pneg %p154
    %p161 = scmp.eq.s32.totalorder %s10, 1
    %p162 = por %p160, %p161
    %p163 = scmp.ne.s32.totalorder %s155, %s158
    %p164 = scmp.eq.s32.totalorder %s10, 0
    %p165 = por %p163, %p164
    %p166 = scmp.ne.s32.totalorder %s155, %s158
    %p167 = scmp.eq.s32.totalorder %s15, 1
    %p168 = por %p166, %p167
    %p169 = scmp.ne.s32.totalorder %s158, %s159
    %p170 = scmp.eq.s32.totalorder %s15, 0
    %p171 = por %p169, %p170
    %p172 = scmp.ne.s32.totalorder %s158, %s159
    %p173 = scmp.eq.s32.totalorder %s16, 1
    %p174 = por %p172, %p173
    %p176 = scmp.ne.s32.totalorder %s159, %s175
    %p177 = scmp.eq.s32.totalorder %s16, 0
    %p178 = por %p176, %p177
    %p179 = scmp.le.s32.totalorder 1, %s10
    %p180 = scmp.lt.s32.totalorder %s10, 3
    %p181 = pnand %p179, %p180
    %p182 = pneg %p181
    // Predicated region
    $region9: #{multi_head_attention.4} parent=5 // pred_check
      _
    $region10: #{multi_head_attention.4} parent=5 // pred_check_branch
      %184 = sbr.rel (%p181) target = $region12
    $region11: #{multi_head_attention.4} parent=5 // pred_region
      %s185 = ssub.s32 %s10, 1
    $region12: #{multi_head_attention.4} parent=5 // pred_fallthru
      _
    %p186 = scmp.lt.s32.totalorder %s10, 2
    // Predicated region
    $region13: #{multi_head_attention.4} parent=5 // pred_check
      %p187 = pneg %p186
    $region14: #{multi_head_attention.4} parent=5 // pred_check_branch
      %189 = sbr.rel (%p187) target = $region16
    $region15: #{multi_head_attention.4} parent=5 // pred_region
      // Predicated region
      $region17: #{multi_head_attention.4} parent=15 // pred_check
        %p190 = pneg %p51
      $region18: #{multi_head_attention.4} parent=15 // pred_check_branch
        %192 = sbr.rel (%p190) target = $region20
      $region19: #{multi_head_attention.4} parent=15 // pred_region
        %p193 = scmp.lt.s32.totalorder %s17, 1
        %s194 = scalar_select %p193, %s17, 1
        %p195 = scmp.lt.s32.totalorder %s18, 0
        %s196 = scalar_select %p195, %s18, 0
        %s197 = sadd.s32 %s196, %s194
        %s198 = smul.addr %s197, 4
        %s199 = scalar_lea.vmem %s0, %s198
      $region20: #{multi_head_attention.4} parent=15 // pred_fallthru
        _
      // Predicated region
      $region21: #{multi_head_attention.4} parent=15 // pred_check
        %p200 = pneg %p79
      $region22: #{multi_head_attention.4} parent=15 // pred_check_branch
        %202 = sbr.rel (%p200) target = $region24
      $region23: #{multi_head_attention.4} parent=15 // pred_region
        %p203 = scmp.lt.s32.totalorder %s17, 1
        %s204 = scalar_select %p203, %s17, 1
        %p205 = scmp.lt.s32.totalorder %s19, 0
        %s206 = scalar_select %p205, %s19, 0
        %s207 = sadd.s32 %s206, %s204
        %s208 = smul.addr %s207, 4
        %s209 = scalar_lea.vmem %s1, %s208
      $region24: #{multi_head_attention.4} parent=15 // pred_fallthru
        _
      // Predicated region
      $region25: #{multi_head_attention.4} parent=15 // pred_check
        %p210 = pneg %p107
      $region26: #{multi_head_attention.4} parent=15 // pred_check_branch
        %212 = sbr.rel (%p210) target = $region28
      $region27: #{multi_head_attention.4} parent=15 // pred_region
        %p213 = scmp.lt.s32.totalorder %s17, 1
        %s214 = scalar_select %p213, %s17, 1
        %p215 = scmp.lt.s32.totalorder %s19, 0
        %s216 = scalar_select %p215, %s19, 0
        %s217 = sadd.s32 %s216, %s214
        %s218 = smul.addr %s217, 4
        %s219 = scalar_lea.vmem %s2, %s218
      $region28: #{multi_head_attention.4} parent=15 // pred_fallthru
        _
      // Predicated region
      $region29: #{multi_head_attention.4} parent=15 // pred_check
        %p220 = pneg %p137
      $region30: #{multi_head_attention.4} parent=15 // pred_check_branch
        %222 = sbr.rel (%p220) target = $region32
      $region31: #{multi_head_attention.4} parent=15 // pred_region
        %p223 = scmp.lt.s32.totalorder %s17, 1
        %s224 = scalar_select %p223, %s17, 1
        %p225 = scmp.lt.s32.totalorder %s18, 0
        %s226 = scalar_select %p225, %s18, 0
        %p227 = scmp.lt.s32.totalorder %s19, 0
        %s228 = scalar_select %p227, %s19, 0
        %s229 = sadd.s32 %s228, %s226
        %s230 = sadd.s32 %s229, %s224
        %s231 = smul.addr %s230, 4
        %s232 = scalar_lea.vmem %s3, %s231
      $region32: #{multi_head_attention.4} parent=15 // pred_fallthru
        _
    $region16: #{multi_head_attention.4} parent=5 // pred_fallthru
      _
    %p233 = scmp.le.s32.totalorder 1, %s10
    %p234 = scmp.lt.s32.totalorder %s10, 3
    %p235 = pnand %p233, %p234
    %p236 = pneg %p235
    // Predicated region
    $region33: #{multi_head_attention.4} parent=5 // pred_check
      _
    $region34: #{multi_head_attention.4} parent=5 // pred_check_branch
      %238 = sbr.rel (%p235) target = $region36
    $region35: #{multi_head_attention.4} parent=5 // pred_region
      %s239 = ssub.s32 %s10, 1
      %p240 = scmp.lt.s32.totalorder %s20, 1
      %s241 = scalar_select %p240, %s20, 1
      %p242 = scmp.lt.s32.totalorder %s21, 0
      %s243 = scalar_select %p242, %s21, 0
      %s244 = sadd.s32 %s243, %s241
      %s245 = smul.addr %s244, 4
      %s246 = scalar_lea.vmem %s0, %s245
      %p247 = pneg %p57
      %p248 = pneg %p54
      %p249 = scmp.lt.s32.totalorder %s20, 1
      %s250 = scalar_select %p249, %s20, 1
      %p251 = scmp.lt.s32.totalorder %s22, 0
      %s252 = scalar_select %p251, %s22, 0
      %s253 = sadd.s32 %s252, %s250
      %s254 = smul.addr %s253, 4
      %s255 = scalar_lea.vmem %s1, %s254
      %p256 = pneg %p85
      %p257 = pneg %p82
      %p258 = scmp.lt.s32.totalorder %s20, 1
      %s259 = scalar_select %p258, %s20, 1
      %p260 = scmp.lt.s32.totalorder %s22, 0
      %s261 = scalar_select %p260, %s22, 0
      %s262 = sadd.s32 %s261, %s259
      %s263 = smul.addr %s262, 4
      %s264 = scalar_lea.vmem %s2, %s263
      %p265 = pneg %p113
      %p266 = pneg %p110
      %p267 = scmp.lt.s32.totalorder %s20, 1
      %s268 = scalar_select %p267, %s20, 1
      %p269 = scmp.lt.s32.totalorder %s21, 0
      %s270 = scalar_select %p269, %s21, 0
      %p271 = scmp.lt.s32.totalorder %s22, 0
      %s272 = scalar_select %p271, %s22, 0
      %s273 = sadd.s32 %s272, %s270
      %s274 = sadd.s32 %s273, %s268
      %s275 = smul.addr %s274, 4
      %s276 = scalar_lea.vmem %s3, %s275
      %p277 = pneg %p143
      %p278 = pneg %p140
      %p279 = pneg %p171
      %p280 = pneg %p168
      %p281 = scmp.lt.s32.totalorder %s20, 1
      %s282 = scalar_select %p281, %s20, 1
      %p283 = scmp.lt.s32.totalorder %s21, 0
      %s284 = scalar_select %p283, %s21, 0
      %s285 = sadd.s32 %s284, %s282
      %s286 = smul.addr %s285, 4
      %s287 = scalar_lea.vmem %s4, %s286
      %p288 = scmp.lt.s32.totalorder %s20, 1
      %s289 = scalar_select %p288, %s20, 1
      %p290 = scmp.lt.s32.totalorder %s21, 0
      %s291 = scalar_select %p290, %s21, 0
      %s292 = sadd.s32 %s291, %s289
      %s293 = smul.addr %s292, 4
      %s294 = scalar_lea.vmem %s0, %s293
      %p295 = scmp.lt.s32.totalorder %s20, 1
      %s296 = scalar_select %p295, %s20, 1
      %p297 = scmp.lt.s32.totalorder %s22, 0
      %s298 = scalar_select %p297, %s22, 0
      %s299 = sadd.s32 %s298, %s296
      %s300 = smul.addr %s299, 4
      %s301 = scalar_lea.vmem %s1, %s300
      %p302 = scmp.lt.s32.totalorder %s20, 1
      %s303 = scalar_select %p302, %s20, 1
      %p304 = scmp.lt.s32.totalorder %s22, 0
      %s305 = scalar_select %p304, %s22, 0
      %s306 = sadd.s32 %s305, %s303
      %s307 = smul.addr %s306, 4
      %s308 = scalar_lea.vmem %s2, %s307
      %p309 = scmp.lt.s32.totalorder %s20, 1
      %s310 = scalar_select %p309, %s20, 1
      %p311 = scmp.lt.s32.totalorder %s21, 0
      %s312 = scalar_select %p311, %s21, 0
      %p313 = scmp.lt.s32.totalorder %s22, 0
      %s314 = scalar_select %p313, %s22, 0
      %s315 = sadd.s32 %s314, %s312
      %s316 = sadd.s32 %s315, %s310
      %s317 = smul.addr %s316, 4
      %s318 = scalar_lea.vmem %s3, %s317
      %p319 = scmp.lt.s32.totalorder %s20, 1
      %s320 = scalar_select %p319, %s20, 1
      %p321 = scmp.lt.s32.totalorder %s21, 0
      %s322 = scalar_select %p321, %s21, 0
      %s323 = sadd.s32 %s322, %s320
      %s324 = smul.addr %s323, 4
      %s325 = scalar_lea.vmem %s4, %s324
      %p327 = scmp.eq.s32.totalorder %s22, 0
      // Predicated region
      $region37: #{multi_head_attention.4} parent=35 // pred_check
        %p328 = pneg %p327
      $region38: #{multi_head_attention.4} parent=35 // pred_check_branch
        %330 = sbr.rel (%p328) target = $region40
      $region39: #{multi_head_attention.4} parent=35 // pred_region
        %vm331 = vcmask 31744
        %332 = vst.msk [vmem:[#allocation2] sm:$0xff] %vm331, -inf
        %333 = vst.msk [vmem:[#allocation3] sm:$0xff] %vm331, 0.0
        %vm334 = vcmask 523264
        %335 = vst.msk [vmem:[#allocation4] sm:$0xff] %vm334, 0.0
      $region40: #{multi_head_attention.4} parent=35 // pred_fallthru
        _
      %v336 = vld [vmem:[%s318] sm:$0xf]
      %v337 = vunpack.c.l.bf16 %v336
      %v338 = vld [vmem:[%s294] sm:$0xf]
      %v339 = vld [vmem:[%s301] sm:$0xf]
      %v340 = vld [vmem:[%s308] sm:$0xf]
      %v341 = vld [vmem:[#allocation2] sm:$0xff]
      %v342 = vld [vmem:[#allocation3] sm:$0xff]
      %v343 = vld [vmem:[#allocation4] sm:$0xff]
      %vm344 = vcmask 130048
      %v346 = vsel %vm344, %v338, 0
      %v349 = vsel %vm344, %v339, 0
      %351 = vmatprep.subr.bf16.mxu0 0
      %352 = vmatpush1.bf16.xpose.msra.mxu0 %v349
      %353 = vmatprep.subr.bf16.mxu0 0
      %354 = vmatpush1.bf16.xpose.msra.mxu0 0
      %355 = vmatprep.subr.bf16.mxu0 0
      %356 = vmatpush1.bf16.xpose.msra.mxu0 0
      %357 = vmatprep.subr.bf16.mxu0 0
      %358 = vmatpush1.bf16.xpose.msra.mxu0 0
      %359 = vmatprep.subr.bf16.mxu0 0
      %360 = vmatpush1.bf16.xpose.msra.mxu0 0
      %361 = vmatprep.subr.bf16.mxu0 0
      %362 = vmatpush1.bf16.xpose.msra.mxu0 0
      %363 = vmatprep.subr.bf16.mxu0 0
      %364 = vmatpush1.bf16.xpose.msra.mxu0 0
      %365 = vmatprep.subr.bf16.mxu0 0
      %366 = vmatpush1.bf16.xpose.msra.mxu0 0
      %367 = vmatprep.subr.bf16.mxu0 0
      %368 = vmatpush1.bf16.xpose.msra.mxu0 0
      %369 = vmatprep.subr.bf16.mxu0 0
      %370 = vmatpush1.bf16.xpose.msra.mxu0 0
      %371 = vmatprep.subr.bf16.mxu0 0
      %372 = vmatpush1.bf16.xpose.msra.mxu0 0
      %373 = vmatprep.subr.bf16.mxu0 0
      %374 = vmatpush1.bf16.xpose.msra.mxu0 0
      %375 = vmatprep.subr.bf16.mxu0 0
      %376 = vmatpush1.bf16.xpose.msra.mxu0 0
      %377 = vmatprep.subr.bf16.mxu0 0
      %378 = vmatpush1.bf16.xpose.msra.mxu0 0
      %379 = vmatprep.subr.bf16.mxu0 0
      %380 = vmatpush1.bf16.xpose.msra.mxu0 0
      %381 = vmatprep.subr.bf16.mxu0 0
      %382 = vmatpush1.bf16.xpose.msra.mxu0 0
      %383 = vmatprep.mubr.bf16.mxu0 0
      %384 = vmatmul.mubr.bf16.gmra.mrb[0].mxu0 %v346
      %v385 = vpop.f32.mrb[0].mxu0
      %v386 = vadd.f32 %v337, %v385
      %v387 = vpop.f32.mrb[0].mxu0
      %v388 = vpop.f32.mrb[0].mxu0
      %v389 = vpop.f32.mrb[0].mxu0
      %390 = vdwg.mxu0
      %vm391 = vcmask 64512
      %v392 = vsel %vm391, %v386, -inf
      %393 = vmax.xlane.f32.xlu0 %v392
      %v394 = vpop.xlane.xlu0 %393
      %v395 = vmax.f32 %v341, %v394
      %v396 = vsub.f32 %v341, %v395
      %v397 = vmul.f32 %v396, 1.442695
      %v398 = vpow.pop %v397
      %400 = vset.pattern.permute.xlu0 0
      %401 = vperm.xlu0 %400, %v395
      %v402 = vpop.permute.xlu0 %401
      %v404 = vsub.f32 %v386, %v402
      %v405 = vmul.f32 %v404, 1.442695
      %v406 = vpow.pop %v405
      %v407 = vmul.f32 %v398, %v342
      %v408 = vsel %vm391, %v406, 0.0
      %409 = vadd.xlane.f32.xlu0 %v408
      %v410 = vpop.xlane.xlu0 %409
      %v411 = vadd.f32 %v407, %v410
      %413 = vset.pattern.permute.xlu0 0
      %414 = vperm.xlu0 %413, %v398
      %v415 = vpop.permute.xlu0 %414
      %v417 = vmul.f32 %v415, %v343
      %v418 = vpack.c.bf16 %v406, %v406
      %v420 = vsel %vm391, %v418, 0
      %vm422 = vcmask 1043456
      %v424 = vsel %vm422, %v340, 0
      %426 = vmatprep.subr.bf16.mxu0 0
      %427 = vmatpush1.bf16.msra.mxu0 %v424
      %428 = vmatprep.subr.bf16.mxu0 0
      %429 = vmatpush1.bf16.msra.mxu0 0
      %430 = vmatprep.subr.bf16.mxu0 0
      %431 = vmatpush1.bf16.msra.mxu0 0
      %432 = vmatprep.subr.bf16.mxu0 0
      %433 = vmatpush1.bf16.msra.mxu0 0
      %434 = vmatprep.subr.bf16.mxu0 0
      %435 = vmatpush1.bf16.msra.mxu0 0
      %436 = vmatprep.subr.bf16.mxu0 0
      %437 = vmatpush1.bf16.msra.mxu0 0
      %438 = vmatprep.subr.bf16.mxu0 0
      %439 = vmatpush1.bf16.msra.mxu0 0
      %440 = vmatprep.subr.bf16.mxu0 0
      %441 = vmatpush1.bf16.msra.mxu0 0
      %442 = vmatprep.subr.bf16.mxu0 0
      %443 = vmatpush1.bf16.msra.mxu0 0
      %444 = vmatprep.subr.bf16.mxu0 0
      %445 = vmatpush1.bf16.msra.mxu0 0
      %446 = vmatprep.subr.bf16.mxu0 0
      %447 = vmatpush1.bf16.msra.mxu0 0
      %448 = vmatprep.subr.bf16.mxu0 0
      %449 = vmatpush1.bf16.msra.mxu0 0
      %450 = vmatprep.subr.bf16.mxu0 0
      %451 = vmatpush1.bf16.msra.mxu0 0
      %452 = vmatprep.subr.bf16.mxu0 0
      %453 = vmatpush1.bf16.msra.mxu0 0
      %454 = vmatprep.subr.bf16.mxu0 0
      %455 = vmatpush1.bf16.msra.mxu0 0
      %456 = vmatprep.subr.bf16.mxu0 0
      %457 = vmatpush1.bf16.msra.mxu0 0
      %458 = vmatprep.mubr.bf16.mxu0 0
      %459 = vmatmul.mubr.bf16.gmra.mrb[0].mxu0 %v420
      %v460 = vpop.f32.mrb[0].mxu0
      %v461 = vadd.f32 0.0, %v460
      %v462 = vpop.f32.mrb[0].mxu0
      %v463 = vpop.f32.mrb[0].mxu0
      %v464 = vpop.f32.mrb[0].mxu0
      %465 = vdwg.mxu0
      %v466 = vadd.f32 %v417, %v461
      %v468 = vunpack.c.l.b16 %v338
      %v469 = vpack.c.b16 %v468, %v468
      %470 = vrot.lane.b32.xlu0 %v469, 112
      %v471 = vpop.permute.xlu0 %470
      %v473 = vunpack.c.l.b16 %v339
      %v474 = vpack.c.b16 %v473, %v473
      %475 = vrot.lane.b32.xlu0 %v474, 112
      %v476 = vpop.permute.xlu0 %475
      %v478 = vsel %vm344, %v471, 0
      %v481 = vsel %vm344, %v476, 0
      %483 = vmatprep.subr.bf16.mxu0 0
      %484 = vmatpush1.bf16.xpose.msra.mxu0 %v481
      %485 = vmatprep.subr.bf16.mxu0 0
      %486 = vmatpush1.bf16.xpose.msra.mxu0 0
      %487 = vmatprep.subr.bf16.mxu0 0
      %488 = vmatpush1.bf16.xpose.msra.mxu0 0
      %489 = vmatprep.subr.bf16.mxu0 0
      %490 = vmatpush1.bf16.xpose.msra.mxu0 0
      %491 = vmatprep.subr.bf16.mxu0 0
      %492 = vmatpush1.bf16.xpose.msra.mxu0 0
      %493 = vmatprep.subr.bf16.mxu0 0
      %494 = vmatpush1.bf16.xpose.msra.mxu0 0
      %495 = vmatprep.subr.bf16.mxu0 0
      %496 = vmatpush1.bf16.xpose.msra.mxu0 0
      %497 = vmatprep.subr.bf16.mxu0 0
      %498 = vmatpush1.bf16.xpose.msra.mxu0 0
      %499 = vmatprep.subr.bf16.mxu0 0
      %500 = vmatpush1.bf16.xpose.msra.mxu0 0
      %501 = vmatprep.subr.bf16.mxu0 0
      %502 = vmatpush1.bf16.xpose.msra.mxu0 0
      %503 = vmatprep.subr.bf16.mxu0 0
      %504 = vmatpush1.bf16.xpose.msra.mxu0 0
      %505 = vmatprep.subr.bf16.mxu0 0
      %506 = vmatpush1.bf16.xpose.msra.mxu0 0
      %507 = vmatprep.subr.bf16.mxu0 0
      %508 = vmatpush1.bf16.xpose.msra.mxu0 0
      %509 = vmatprep.subr.bf16.mxu0 0
      %510 = vmatpush1.bf16.xpose.msra.mxu0 0
      %511 = vmatprep.subr.bf16.mxu0 0
      %512 = vmatpush1.bf16.xpose.msra.mxu0 0
      %513 = vmatprep.subr.bf16.mxu0 0
      %514 = vmatpush1.bf16.xpose.msra.mxu0 0
      %515 = vmatprep.mubr.bf16.mxu0 0
      %516 = vmatmul.mubr.bf16.gmra.mrb[0].mxu0 %v478
      %v517 = vpop.f32.mrb[0].mxu0
      %v518 = vadd.f32 %v337, %v517
      %v519 = vpop.f32.mrb[0].mxu0
      %v520 = vpop.f32.mrb[0].mxu0
      %v521 = vpop.f32.mrb[0].mxu0
      %522 = vdwg.mxu0
      %v523 = vsel %vm391, %v518, -inf
      %524 = vmax.xlane.f32.xlu0 %v523
      %v525 = vpop.xlane.xlu0 %524
      %v526 = vmax.f32 %v341, %v525
      %v527 = vsub.f32 %v341, %v526
      %v528 = vmul.f32 %v527, 1.442695
      %v529 = vpow.pop %v528
      %531 = vset.pattern.permute.xlu0 1
      %532 = vperm.xlu0 %531, %v526
      %v533 = vpop.permute.xlu0 %532
      %v535 = vsub.f32 %v518, %v533
      %v536 = vmul.f32 %v535, 1.442695
      %v537 = vpow.pop %v536
      %v538 = vmul.f32 %v529, %v342
      %v539 = vsel %vm391, %v537, 0.0
      %540 = vadd.xlane.f32.xlu0 %v539
      %v541 = vpop.xlane.xlu0 %540
      %v542 = vadd.f32 %v538, %v541
      %544 = vset.pattern.permute.xlu0 1
      %545 = vperm.xlu0 %544, %v529
      %v546 = vpop.permute.xlu0 %545
      %v548 = vmul.f32 %v546, %v343
      %v549 = vpack.c.bf16 %v537, %v537
      %v551 = vunpack.c.l.b16 %v340
      %v552 = vpack.c.b16 %v551, %v551
      %553 = vrot.lane.b32.xlu0 %v552, 112
      %v554 = vpop.permute.xlu0 %553
      %v556 = vsel %vm391, %v549, 0
      %v559 = vsel %vm422, %v554, 0
      %561 = vmatprep.subr.bf16.mxu0 0
      %562 = vmatpush1.bf16.msra.mxu0 %v559
      %563 = vmatprep.subr.bf16.mxu0 0
      %564 = vmatpush1.bf16.msra.mxu0 0
      %565 = vmatprep.subr.bf16.mxu0 0
      %566 = vmatpush1.bf16.msra.mxu0 0
      %567 = vmatprep.subr.bf16.mxu0 0
      %568 = vmatpush1.bf16.msra.mxu0 0
      %569 = vmatprep.subr.bf16.mxu0 0
      %570 = vmatpush1.bf16.msra.mxu0 0
      %571 = vmatprep.subr.bf16.mxu0 0
      %572 = vmatpush1.bf16.msra.mxu0 0
      %573 = vmatprep.subr.bf16.mxu0 0
      %574 = vmatpush1.bf16.msra.mxu0 0
      %575 = vmatprep.subr.bf16.mxu0 0
      %576 = vmatpush1.bf16.msra.mxu0 0
      %577 = vmatprep.subr.bf16.mxu0 0
      %578 = vmatpush1.bf16.msra.mxu0 0
      %579 = vmatprep.subr.bf16.mxu0 0
      %580 = vmatpush1.bf16.msra.mxu0 0
      %581 = vmatprep.subr.bf16.mxu0 0
      %582 = vmatpush1.bf16.msra.mxu0 0
      %583 = vmatprep.subr.bf16.mxu0 0
      %584 = vmatpush1.bf16.msra.mxu0 0
      %585 = vmatprep.subr.bf16.mxu0 0
      %586 = vmatpush1.bf16.msra.mxu0 0
      %587 = vmatprep.subr.bf16.mxu0 0
      %588 = vmatpush1.bf16.msra.mxu0 0
      %589 = vmatprep.subr.bf16.mxu0 0
      %590 = vmatpush1.bf16.msra.mxu0 0
      %591 = vmatprep.subr.bf16.mxu0 0
      %592 = vmatpush1.bf16.msra.mxu0 0
      %593 = vmatprep.mubr.bf16.mxu0 0
      %594 = vmatmul.mubr.bf16.gmra.mrb[0].mxu0 %v556
      %v595 = vpop.f32.mrb[0].mxu0
      %v596 = vadd.f32 0.0, %v595
      %v597 = vpop.f32.mrb[0].mxu0
      %v598 = vpop.f32.mrb[0].mxu0
      %v599 = vpop.f32.mrb[0].mxu0
      %600 = vdwg.mxu0
      %602 = vrot.lane.b32.xlu0 %v596, 16
      %v603 = vpop.permute.xlu0 %602
      %v605 = vadd.f32 %v548, %v603
      %606 = vrot.lane.b32.xlu0 %v469, 96
      %v607 = vpop.permute.xlu0 %606
      %608 = vrot.lane.b32.xlu0 %v474, 96
      %v609 = vpop.permute.xlu0 %608
      %v611 = vsel %vm344, %v607, 0
      %v614 = vsel %vm344, %v609, 0
      %616 = vmatprep.subr.bf16.mxu0 0
      %617 = vmatpush1.bf16.xpose.msra.mxu0 %v614
      %618 = vmatprep.subr.bf16.mxu0 0
      %619 = vmatpush1.bf16.xpose.msra.mxu0 0
      %620 = vmatprep.subr.bf16.mxu0 0
      %621 = vmatpush1.bf16.xpose.msra.mxu0 0
      %622 = vmatprep.subr.bf16.mxu0 0
      %623 = vmatpush1.bf16.xpose.msra.mxu0 0
      %624 = vmatprep.subr.bf16.mxu0 0
      %625 = vmatpush1.bf16.xpose.msra.mxu0 0
      %626 = vmatprep.subr.bf16.mxu0 0
      %627 = vmatpush1.bf16.xpose.msra.mxu0 0
      %628 = vmatprep.subr.bf16.mxu0 0
      %629 = vmatpush1.bf16.xpose.msra.mxu0 0
      %630 = vmatprep.subr.bf16.mxu0 0
      %631 = vmatpush1.bf16.xpose.msra.mxu0 0
      %632 = vmatprep.subr.bf16.mxu0 0
      %633 = vmatpush1.bf16.xpose.msra.mxu0 0
      %634 = vmatprep.subr.bf16.mxu0 0
      %635 = vmatpush1.bf16.xpose.msra.mxu0 0
      %636 = vmatprep.subr.bf16.mxu0 0
      %637 = vmatpush1.bf16.xpose.msra.mxu0 0
      %638 = vmatprep.subr.bf16.mxu0 0
      %639 = vmatpush1.bf16.xpose.msra.mxu0 0
      %640 = vmatprep.subr.bf16.mxu0 0
      %641 = vmatpush1.bf16.xpose.msra.mxu0 0
      %642 = vmatprep.subr.bf16.mxu0 0
      %643 = vmatpush1.bf16.xpose.msra.mxu0 0
      %644 = vmatprep.subr.bf16.mxu0 0
      %645 = vmatpush1.bf16.xpose.msra.mxu0 0
      %646 = vmatprep.subr.bf16.mxu0 0
      %647 = vmatpush1.bf16.xpose.msra.mxu0 0
      %648 = vmatprep.mubr.bf16.mxu0 0
      %649 = vmatmul.mubr.bf16.gmra.mrb[0].mxu0 %v611
      %v650 = vpop.f32.mrb[0].mxu0
      %v651 = vadd.f32 %v337, %v650
      %v652 = vpop.f32.mrb[0].mxu0
      %v653 = vpop.f32.mrb[0].mxu0
      %v654 = vpop.f32.mrb[0].mxu0
      %655 = vdwg.mxu0
      %v656 = vsel %vm391, %v651, -inf
      %657 = vmax.xlane.f32.xlu0 %v656
      %v658 = vpop.xlane.xlu0 %657
      %v659 = vmax.f32 %v341, %v658
      %v660 = vsub.f32 %v341, %v659
      %v661 = vmul.f32 %v660, 1.442695
      %v662 = vpow.pop %v661
      %664 = vset.pattern.permute.xlu0 2
      %665 = vperm.xlu0 %664, %v659
      %v666 = vpop.permute.xlu0 %665
      %v668 = vsub.f32 %v651, %v666
      %v669 = vmul.f32 %v668, 1.442695
      %v670 = vpow.pop %v669
      %v671 = vmul.f32 %v662, %v342
      %v672 = vsel %vm391, %v670, 0.0
      %673 = vadd.xlane.f32.xlu0 %v672
      %v674 = vpop.xlane.xlu0 %673
      %v675 = vadd.f32 %v671, %v674
      %677 = vset.pattern.permute.xlu0 2
      %678 = vperm.xlu0 %677, %v662
      %v679 = vpop.permute.xlu0 %678
      %v681 = vmul.f32 %v679, %v343
      %v682 = vpack.c.bf16 %v670, %v670
      %683 = vrot.lane.b32.xlu0 %v552, 96
      %v684 = vpop.permute.xlu0 %683
      %v686 = vsel %vm391, %v682, 0
      %v689 = vsel %vm422, %v684, 0
      %691 = vmatprep.subr.bf16.mxu0 0
      %692 = vmatpush1.bf16.msra.mxu0 %v689
      %693 = vmatprep.subr.bf16.mxu0 0
      %694 = vmatpush1.bf16.msra.mxu0 0
      %695 = vmatprep.subr.bf16.mxu0 0
      %696 = vmatpush1.bf16.msra.mxu0 0
      %697 = vmatprep.subr.bf16.mxu0 0
      %698 = vmatpush1.bf16.msra.mxu0 0
      %699 = vmatprep.subr.bf16.mxu0 0
      %700 = vmatpush1.bf16.msra.mxu0 0
      %701 = vmatprep.subr.bf16.mxu0 0
      %702 = vmatpush1.bf16.msra.mxu0 0
      %703 = vmatprep.subr.bf16.mxu0 0
      %704 = vmatpush1.bf16.msra.mxu0 0
      %705 = vmatprep.subr.bf16.mxu0 0
      %706 = vmatpush1.bf16.msra.mxu0 0
      %707 = vmatprep.subr.bf16.mxu0 0
      %708 = vmatpush1.bf16.msra.mxu0 0
      %709 = vmatprep.subr.bf16.mxu0 0
      %710 = vmatpush1.bf16.msra.mxu0 0
      %711 = vmatprep.subr.bf16.mxu0 0
      %712 = vmatpush1.bf16.msra.mxu0 0
      %713 = vmatprep.subr.bf16.mxu0 0
      %714 = vmatpush1.bf16.msra.mxu0 0
      %715 = vmatprep.subr.bf16.mxu0 0
      %716 = vmatpush1.bf16.msra.mxu0 0
      %717 = vmatprep.subr.bf16.mxu0 0
      %718 = vmatpush1.bf16.msra.mxu0 0
      %719 = vmatprep.subr.bf16.mxu0 0
      %720 = vmatpush1.bf16.msra.mxu0 0
      %721 = vmatprep.subr.bf16.mxu0 0
      %722 = vmatpush1.bf16.msra.mxu0 0
      %723 = vmatprep.mubr.bf16.mxu0 0
      %724 = vmatmul.mubr.bf16.gmra.mrb[0].mxu0 %v686
      %v725 = vpop.f32.mrb[0].mxu0
      %v726 = vadd.f32 0.0, %v725
      %v727 = vpop.f32.mrb[0].mxu0
      %v728 = vpop.f32.mrb[0].mxu0
      %v729 = vpop.f32.mrb[0].mxu0
      %730 = vdwg.mxu0
      %732 = vrot.lane.b32.xlu0 %v726, 32
      %v733 = vpop.permute.xlu0 %732
      %v735 = vadd.f32 %v681, %v733
      %736 = vrot.lane.b32.xlu0 %v469, 80
      %v737 = vpop.permute.xlu0 %736
      %738 = vrot.lane.b32.xlu0 %v474, 80
      %v739 = vpop.permute.xlu0 %738
      %v741 = vsel %vm344, %v737, 0
      %v744 = vsel %vm344, %v739, 0
      %746 = vmatprep.subr.bf16.mxu0 0
      %747 = vmatpush1.bf16.xpose.msra.mxu0 %v744
      %748 = vmatprep.subr.bf16.mxu0 0
      %749 = vmatpush1.bf16.xpose.msra.mxu0 0
      %750 = vmatprep.subr.bf16.mxu0 0
      %751 = vmatpush1.bf16.xpose.msra.mxu0 0
      %752 = vmatprep.subr.bf16.mxu0 0
      %753 = vmatpush1.bf16.xpose.msra.mxu0 0
      %754 = vmatprep.subr.bf16.mxu0 0
      %755 = vmatpush1.bf16.xpose.msra.mxu0 0
      %756 = vmatprep.subr.bf16.mxu0 0
      %757 = vmatpush1.bf16.xpose.msra.mxu0 0
      %758 = vmatprep.subr.bf16.mxu0 0
      %759 = vmatpush1.bf16.xpose.msra.mxu0 0
      %760 = vmatprep.subr.bf16.mxu0 0
      %761 = vmatpush1.bf16.xpose.msra.mxu0 0
      %762 = vmatprep.subr.bf16.mxu0 0
      %763 = vmatpush1.bf16.xpose.msra.mxu0 0
      %764 = vmatprep.subr.bf16.mxu0 0
      %765 = vmatpush1.bf16.xpose.msra.mxu0 0
      %766 = vmatprep.subr.bf16.mxu0 0
      %767 = vmatpush1.bf16.xpose.msra.mxu0 0
      %768 = vmatprep.subr.bf16.mxu0 0
      %769 = vmatpush1.bf16.xpose.msra.mxu0 0
      %770 = vmatprep.subr.bf16.mxu0 0
      %771 = vmatpush1.bf16.xpose.msra.mxu0 0
      %772 = vmatprep.subr.bf16.mxu0 0
      %773 = vmatpush1.bf16.xpose.msra.mxu0 0
      %774 = vmatprep.subr.bf16.mxu0 0
      %775 = vmatpush1.bf16.xpose.msra.mxu0 0
      %776 = vmatprep.subr.bf16.mxu0 0
      %777 = vmatpush1.bf16.xpose.msra.mxu0 0
      %778 = vmatprep.mubr.bf16.mxu0 0
      %779 = vmatmul.mubr.bf16.gmra.mrb[0].mxu0 %v741
      %v780 = vpop.f32.mrb[0].mxu0
      %v781 = vadd.f32 %v337, %v780
      %v782 = vpop.f32.mrb[0].mxu0
      %v783 = vpop.f32.mrb[0].mxu0
      %v784 = vpop.f32.mrb[0].mxu0
      %785 = vdwg.mxu0
      %v786 = vsel %vm391, %v781, -inf
      %787 = vmax.xlane.f32.xlu0 %v786
      %v788 = vpop.xlane.xlu0 %787
      %v789 = vmax.f32 %v341, %v788
      %v790 = vsub.f32 %v341, %v789
      %v791 = vmul.f32 %v790, 1.442695
      %v792 = vpow.pop %v791
      %794 = vset.pattern.permute.xlu0 3
      %795 = vperm.xlu0 %794, %v789
      %v796 = vpop.permute.xlu0 %795
      %v798 = vsub.f32 %v781, %v796
      %v799 = vmul.f32 %v798, 1.442695
      %v800 = vpow.pop %v799
      %v801 = vmul.f32 %v792, %v342
      %v802 = vsel %vm391, %v800, 0.0
      %803 = vadd.xlane.f32.xlu0 %v802
      %v804 = vpop.xlane.xlu0 %803
      %v805 = vadd.f32 %v801, %v804
      %807 = vset.pattern.permute.xlu0 3
      %808 = vperm.xlu0 %807, %v792
      %v809 = vpop.permute.xlu0 %808
      %v811 = vmul.f32 %v809, %v343
      %v812 = vpack.c.bf16 %v800, %v800
      %813 = vrot.lane.b32.xlu0 %v552, 80
      %v814 = vpop.permute.xlu0 %813
      %v816 = vsel %vm391, %v812, 0
      %v819 = vsel %vm422, %v814, 0
      %821 = vmatprep.subr.bf16.mxu0 0
      %822 = vmatpush1.bf16.msra.mxu0 %v819
      %823 = vmatprep.subr.bf16.mxu0 0
      %824 = vmatpush1.bf16.msra.mxu0 0
      %825 = vmatprep.subr.bf16.mxu0 0
      %826 = vmatpush1.bf16.msra.mxu0 0
      %827 = vmatprep.subr.bf16.mxu0 0
      %828 = vmatpush1.bf16.msra.mxu0 0
      %829 = vmatprep.subr.bf16.mxu0 0
      %830 = vmatpush1.bf16.msra.mxu0 0
      %831 = vmatprep.subr.bf16.mxu0 0
      %832 = vmatpush1.bf16.msra.mxu0 0
      %833 = vmatprep.subr.bf16.mxu0 0
      %834 = vmatpush1.bf16.msra.mxu0 0
      %835 = vmatprep.subr.bf16.mxu0 0
      %836 = vmatpush1.bf16.msra.mxu0 0
      %837 = vmatprep.subr.bf16.mxu0 0
      %838 = vmatpush1.bf16.msra.mxu0 0
      %839 = vmatprep.subr.bf16.mxu0 0
      %840 = vmatpush1.bf16.msra.mxu0 0
      %841 = vmatprep.subr.bf16.mxu0 0
      %842 = vmatpush1.bf16.msra.mxu0 0
      %843 = vmatprep.subr.bf16.mxu0 0
      %844 = vmatpush1.bf16.msra.mxu0 0
      %845 = vmatprep.subr.bf16.mxu0 0
      %846 = vmatpush1.bf16.msra.mxu0 0
      %847 = vmatprep.subr.bf16.mxu0 0
      %848 = vmatpush1.bf16.msra.mxu0 0
      %849 = vmatprep.subr.bf16.mxu0 0
      %850 = vmatpush1.bf16.msra.mxu0 0
      %851 = vmatprep.subr.bf16.mxu0 0
      %852 = vmatpush1.bf16.msra.mxu0 0
      %853 = vmatprep.mubr.bf16.mxu0 0
      %854 = vmatmul.mubr.bf16.gmra.mrb[0].mxu0 %v816
      %v855 = vpop.f32.mrb[0].mxu0
      %v856 = vadd.f32 0.0, %v855
      %v857 = vpop.f32.mrb[0].mxu0
      %v858 = vpop.f32.mrb[0].mxu0
      %v859 = vpop.f32.mrb[0].mxu0
      %860 = vdwg.mxu0
      %862 = vrot.lane.b32.xlu0 %v856, 48
      %v863 = vpop.permute.xlu0 %862
      %v865 = vadd.f32 %v811, %v863
      %vm866 = vcmask 7168
      %v867 = vsel %vm866, %v395, %v526
      %vm868 = vcmask 15360
      %v869 = vsel %vm868, %v867, %v659
      %vm870 = vcmask 23552
      %v871 = vsel %vm870, %v869, %v789
      %vm872 = vcmask 31744
      %873 = vst.msk [vmem:[#allocation2] sm:$0xff] %vm872, %v871
      %v874 = vsel %vm866, %v411, %v542
      %v875 = vsel %vm868, %v874, %v675
      %v876 = vsel %vm870, %v875, %v805
      %877 = vst.msk [vmem:[#allocation3] sm:$0xff] %vm872, %v876
      %v878 = vsel %vm344, %v466, %v605
      %vm879 = vcmask 261120
      %v880 = vsel %vm879, %v878, %v735
      %vm881 = vcmask 392192
      %v882 = vsel %vm881, %v880, %v865
      %vm883 = vcmask 523264
      %884 = vst.msk [vmem:[#allocation4] sm:$0xff] %vm883, %v882
      // Predicated region
      $region41: #{multi_head_attention.4} parent=35 // pred_check
        %p885 = pneg %p327
      $region42: #{multi_head_attention.4} parent=35 // pred_check_branch
        %887 = sbr.rel (%p885) target = $region44
      $region43: #{multi_head_attention.4} parent=35 // pred_region
        %v888 = vld [vmem:[#allocation3] sm:$0xff]
        %v889 = vrcp.pop %v888
        %v890 = vld [vmem:[#allocation4] sm:$0xff]
        %892 = vset.pattern.permute.xlu0 0
        %893 = vperm.xlu0 %892, %v889
        %v894 = vpop.permute.xlu0 %893
        %v896 = vmul.f32 %v890, %v894
        %897 = vset.pattern.permute.xlu0 1
        %898 = vperm.xlu0 %897, %v889
        %v899 = vpop.permute.xlu0 %898
        %v901 = vmul.f32 %v890, %v899
        %902 = vset.pattern.permute.xlu0 2
        %903 = vperm.xlu0 %902, %v889
        %v904 = vpop.permute.xlu0 %903
        %v906 = vmul.f32 %v890, %v904
        %907 = vset.pattern.permute.xlu0 3
        %908 = vperm.xlu0 %907, %v889
        %v909 = vpop.permute.xlu0 %908
        %v911 = vmul.f32 %v890, %v909
        %v912 = vsel %vm344, %v896, %v901
        %v913 = vsel %vm879, %v912, %v906
        %v914 = vsel %vm881, %v913, %v911
        %v915 = vpack.c.bf16 %v914, %v914
        %vm916 = vcmask 519168
        %917 = vst.msk [vmem:[%s325] sm:$0xf] %vm916, %v915
      $region44: #{multi_head_attention.4} parent=35 // pred_fallthru
        _
      %p918 = scmp.lt.s32.totalorder %s20, 1
      %s919 = scalar_select %p918, %s20, 1
      %p920 = scmp.lt.s32.totalorder %s21, 0
      %s921 = scalar_select %p920, %s21, 0
      %s922 = sadd.s32 %s921, %s919
      %s923 = smul.addr %s922, 4
      %s924 = scalar_lea.vmem %s4, %s923
      // Predicated region
      $region45: #{multi_head_attention.4} parent=35 // pred_check
        %p925 = pneg %p168
      $region46: #{multi_head_attention.4} parent=35 // pred_check_branch
        %927 = sbr.rel (%p925) target = $region48
      $region47: #{multi_head_attention.4} parent=35 // pred_region
        _
      $region48: #{multi_head_attention.4} parent=35 // pred_fallthru
        _
    $region36: #{multi_head_attention.4} parent=5 // pred_fallthru
      _
    %p928 = scmp.le.s32.totalorder 2, %s10
    // Predicated region
    $region49: #{multi_head_attention.4} parent=5 // pred_check
      %p929 = pneg %p928
    $region50: #{multi_head_attention.4} parent=5 // pred_check_branch
      %931 = sbr.rel (%p929) target = $region52
    $region51: #{multi_head_attention.4} parent=5 // pred_region
      %s932 = ssub.s32 %s10, 2
      // Predicated region
      $region53: #{multi_head_attention.4} parent=51 // pred_check
        %p933 = pneg %p174
      $region54: #{multi_head_attention.4} parent=51 // pred_check_branch
        %935 = sbr.rel (%p933) target = $region56
      $region55: #{multi_head_attention.4} parent=51 // pred_region
        %p936 = scmp.lt.s32.totalorder %s23, 1
        %s937 = scalar_select %p936, %s23, 1
        %p938 = scmp.lt.s32.totalorder %s24, 0
        %s939 = scalar_select %p938, %s24, 0
        %s940 = sadd.s32 %s939, %s937
        %s941 = smul.addr %s940, 4
        %s942 = scalar_lea.vmem %s4, %s941
      $region56: #{multi_head_attention.4} parent=51 // pred_fallthru
        _
    $region52: #{multi_head_attention.4} parent=5 // pred_fallthru
      _
  $region6: #{multi_head_attention.4} parent=0 // loop_footer
    %s14 = sadd.s32 1, %s10
  $region7: #{multi_head_attention.4} parent=0 // loop_footer_branch
    %9 = sbr.rel target = $region3
  $region8: #{multi_head_attention.4} parent=0 // loop_exit
    _

</llo_original>
